<compile_context>
chip_gen: v5e
topology: v5e:2x2
jax: 0.10.0
libtpu: 0.0.40
codegen_flags: <defaults>
</compile_context>

<pallas_src>
import functools

import jax
import jax.numpy as jnp
from jax.experimental import pallas as pl
from jax.experimental.pallas import tpu as pltpu


def _round_up(x, m):
    return (x + m - 1) // m * m


# ----------------------------------------------------------------------------
# Kernel: one grid step == one chunk of Tt timesteps.
# ----------------------------------------------------------------------------
def performance_rnn_kernel(concat_ref, w_in_ref, b_in_ref,
                           w_ih_ref, b_ih_ref, w_hh_ref, b_hh_ref,
                           h0_ref, w_out_ref, b_out_ref,
                           out_ref, hnew_ref,
                           x_scr, gx0_scr, h_hist,
                           *, valid_T, needs_mask):
    """One grid step processes Tt chained RNN timesteps.

    concat_ref : (Tt, Bp, CDp) bf16  per-chunk streamed input tile
    w_*        : bf16 weights, VMEM-resident across the whole grid
    b_*        : f32 biases pre-broadcast to (Bp, .), VMEM-resident
    h0_ref     : (L, Bp, Hp) f32     initial hidden (read only at chunk 0)
    out_ref    : (Tt, Bp, Ep) f32    per-chunk logits tile
    hnew_ref   : (L, Bp, Hp) f32     resident output block == hidden carry
    x_scr      : (Tt, Bp, Hp) f32    scratch: batched input-FC activations
    gx0_scr    : (Tt, Bp, 3Hp) f32   scratch: batched layer-0 input gates
    h_hist     : (L, Tt, Bp, Hp) f32 scratch: per-step hidden history
    Gate g of layer l lives in lanes [g*Hp : g*Hp + H] of the 3*Hp gate axis.
    """
    L, Bp, Hp = hnew_ref.shape
    Tt = concat_ref.shape[0]
    CDp = concat_ref.shape[-1]
    Ep = out_ref.shape[-1]
    c = pl.program_id(0)

    # Seed the VMEM-resident hidden carry from the initial state.
    # NOTE: hnew_ref's HBM buffer is aliased to h0's (input_output_aliases) and
    # hnew is written back only at end-of-grid (constant-index out_spec), so
    # this seed read always sees the untouched h0.  Do not change hnew's
    # out_spec / buffering without re-checking this invariant.
    @pl.when(c == 0)
    def _():
        hnew_ref[...] = h0_ref[...]

    # ---- Carry-independent precompute, batched over the whole chunk --------
    # concat_input_fc + LeakyReLU(0.1) for all Tt steps in one (Tt*Bp, CDp) matmul.
    concat2 = concat_ref[...].reshape(Tt * Bp, CDp)
    x_all = jnp.dot(concat2, w_in_ref[...], preferred_element_type=jnp.float32)
    x_all = x_all.reshape(Tt, Bp, Hp) + b_in_ref[...]
    x_all = jnp.where(x_all > 0.0, x_all, 0.1 * x_all)          # LeakyReLU(0.1)
    x_scr[...] = x_all

    # Layer-0 input-to-hidden gates for all Tt steps (input-only dependence).
    gx0 = jnp.dot(x_all.reshape(Tt * Bp, Hp).astype(jnp.bfloat16), w_ih_ref[0],
                  preferred_element_type=jnp.float32)
    gx0_scr[...] = gx0.reshape(Tt, Bp, 3 * Hp) + b_ih_ref[0]

    # ---- Serial GRU recurrence over the chunk (static unroll) --------------
    h_cur = [hnew_ref[l] for l in range(L)]
    for s in range(Tt):
        # Hoisted recurrent-gate matmuls: depend only on the OLD hidden, so all
        # L MXU pushes are issued before this step's serial layer chain.
        gh = [jnp.dot(h_cur[l].astype(jnp.bfloat16), w_hh_ref[l],
                      preferred_element_type=jnp.float32) + b_hh_ref[l]
              for l in range(L)]
        x = x_scr[s]
        gx = gx0_scr[s]
        for l in range(L):
            if l > 0:
                gx = jnp.dot(x.astype(jnp.bfloat16), w_ih_ref[l],
                             preferred_element_type=jnp.float32) + b_ih_ref[l]
            g = gh[l]
            h_old = h_cur[l]
            # Whole-vreg gate slices; all gate math stays f32 (v5e-safe).
            r = jax.nn.sigmoid(gx[:, 0 * Hp:1 * Hp] + g[:, 0 * Hp:1 * Hp])
            z = jax.nn.sigmoid(gx[:, 1 * Hp:2 * Hp] + g[:, 1 * Hp:2 * Hp])
            n = jnp.tanh(gx[:, 2 * Hp:3 * Hp] + r * g[:, 2 * Hp:3 * Hp])
            h_new = (1.0 - z) * n + z * h_old
            if needs_mask:  # traced only when T % Tt != 0 (zero-padded tail)
                h_new = jnp.where(c * Tt + s < valid_T, h_new, h_old)
            h_cur[l] = h_new
            h_hist[l, s] = h_new
            x = h_new

    for l in range(L):                      # write the carry back once per chunk
        hnew_ref[l] = h_cur[l]

    # ---- Deferred output projection, batched over the chunk ----------------
    out_all = jnp.dot(h_hist[0].reshape(Tt * Bp, Hp).astype(jnp.bfloat16),
                      w_out_ref[0], preferred_element_type=jnp.float32)
    for l in range(1, L):
        out_all = out_all + jnp.dot(
            h_hist[l].reshape(Tt * Bp, Hp).astype(jnp.bfloat16), w_out_ref[l],
            preferred_element_type=jnp.float32)
    out_ref[...] = out_all.reshape(Tt, Bp, Ep) + b_out_ref[...]


# ----------------------------------------------------------------------------
# Parameter construction / packing
# ----------------------------------------------------------------------------
def init_params(key, event_dim, control_dim, hidden_dim, gru_layers=3):
    """Logical f32 params (torch-equivalent init) + padded bf16 kernel pack."""
    E, C, H, L = event_dim, control_dim, hidden_dim, gru_layers
    CD = E + 1 + C
    ks = iter(jax.random.split(key, 4 + 4 * L))

    def xavier_normal(k, out_f, in_f):
        std = (2.0 / (in_f + out_f)) ** 0.5
        return std * jax.random.normal(k, (out_f, in_f), jnp.float32)

    def uniform_(k, shape):
        bound = 1.0 / (H ** 0.5)
        return jax.random.uniform(k, shape, jnp.float32, -bound, bound)

    emb = xavier_normal(next(ks), E, E)                      # event_embedding
    w_in_t = xavier_normal(next(ks), H, CD).T                # (CD, H)
    b_in = uniform_(next(ks), (H,))                          # nn.Linear default bias
    w_ih_t = jnp.stack([uniform_(next(ks), (H, 3 * H)) for _ in range(L)])
    w_hh_t = jnp.stack([uniform_(next(ks), (H, 3 * H)) for _ in range(L)])
    b_ih = jnp.stack([uniform_(next(ks), (3 * H,)) for _ in range(L)])
    b_hh = jnp.stack([uniform_(next(ks), (3 * H,)) for _ in range(L)])
    w_out_t = xavier_normal(next(ks), E, L * H).T            # (L*H, E)
    b_out = jnp.zeros((E,), jnp.float32)                     # output_fc.bias = 0

    # ---- pack to (8,128)-aligned, gate-aligned, bf16-weight layout ----
    Hp, Ep, CDp = _round_up(H, 128), _round_up(E, 128), _round_up(CD, 128)
    SUB = 8  # sublane tile; biases pre-broadcast over these rows at pack time

    def pad2(x, rp, cp):
        return jnp.zeros((rp, cp), x.dtype).at[:x.shape[0], :x.shape[1]].set(x)

    def pad_gates_w(w):      # (H, 3H) -> (Hp, 3Hp), each gate on a 128-lane slab
        out = jnp.zeros((Hp, 3 * Hp), jnp.float32)
        for g in range(3):
            out = out.at[:H, g * Hp:g * Hp + H].set(w[:, g * H:(g + 1) * H])
        return out

    def pad_gates_b(b):      # (3H,) -> (SUB, 3Hp) pre-broadcast
        out = jnp.zeros((SUB, 3 * Hp), jnp.float32)
        for g in range(3):
            out = out.at[:, g * Hp:g * Hp + H].set(
                jnp.broadcast_to(b[g * H:(g + 1) * H], (SUB, H)))
        return out

    packed = dict(
        w_in_p=pad2(w_in_t, CDp, Hp).astype(jnp.bfloat16),
        b_in_p=jnp.zeros((SUB, Hp), jnp.float32)
            .at[:, :H].set(jnp.broadcast_to(b_in, (SUB, H))),
        w_ih_p=jnp.stack([pad_gates_w(w_ih_t[l]) for l in range(L)]).astype(jnp.bfloat16),
        b_ih_p=jnp.stack([pad_gates_b(b_ih[l]) for l in range(L)]),
        w_hh_p=jnp.stack([pad_gates_w(w_hh_t[l]) for l in range(L)]).astype(jnp.bfloat16),
        b_hh_p=jnp.stack([pad_gates_b(b_hh[l]) for l in range(L)]),
        w_out_p=jnp.stack([pad2(w_out_t[l * H:(l + 1) * H], Hp, Ep)
                           for l in range(L)]).astype(jnp.bfloat16),
        b_out_p=jnp.zeros((SUB, Ep), jnp.float32)
            .at[:, :E].set(jnp.broadcast_to(b_out, (SUB, E))),
    )

    return dict(
        event_embedding=emb, w_in_t=w_in_t, b_in=b_in,
        w_ih_t=w_ih_t, b_ih=b_ih, w_hh_t=w_hh_t, b_hh=b_hh,
        w_out_t=w_out_t, b_out=b_out,
        event_dim=E, control_dim=C, hidden_dim=H, gru_layers=L, concat_dim=CD,
        packed=packed,
    )


# ----------------------------------------------------------------------------
# Wrappers
# ----------------------------------------------------------------------------
def _build_concat(params, events, controls):
    """events: (T,B) int32; controls: None or (T,B,C). Plain-JAX glue."""
    T, B = events.shape
    C = params["control_dim"]
    emb = params["event_embedding"][events]                  # (T, B, E) gather
    if controls is None:
        default = jnp.ones((T, B, 1), jnp.float32)
        ctl = jnp.zeros((T, B, C), jnp.float32)
    else:
        assert controls.shape == (T, B, C)
        default = jnp.zeros((T, B, 1), jnp.float32)
        ctl = controls.astype(jnp.float32)
    return jnp.concatenate([emb.astype(jnp.float32), default, ctl], axis=-1)


def _resident_spec(shape):
    nd = len(shape)
    return pl.BlockSpec(shape, lambda c, _nd=nd: (0,) * _nd)


def _vmem_limit_bytes(packed, Tt, Bp, CDp, Hp, Ep, L):
    """Raise the scoped-VMEM limit only when the resident footprint needs it.

    Constant-index inputs are double-buffered by default; at production H this
    exceeds the 32 MiB scoped default on v6e even though it fits 128 MiB
    physical.  (On v7x, where physical VMEM is 64 MiB/TC, also single-buffer
    the weights — see TODO at top of file.)
    """
    def nbytes(a):
        return int(a.size) * a.dtype.itemsize

    resident_in = sum(nbytes(v) for v in packed.values()) + L * Bp * Hp * 4  # + h0
    stream_in = Tt * Bp * CDp * 2                                            # bf16 concat
    outs = Tt * Bp * Ep * 4 + L * Bp * Hp * 4
    scratch = (Tt * Bp * Hp + Tt * Bp * 3 * Hp + L * Tt * Bp * Hp) * 4
    total = 2 * (resident_in + stream_in + outs) + scratch
    if total <= 24 * 1024 * 1024:
        return None      # comfortably under every generation's scoped default
    return int(total * 1.25)


def _call_kernel(packed, concat_p, hidden_p, Tt, valid_T):
    Tp, Bp, CDp = concat_p.shape
    L, _, Hp = hidden_p.shape
    Ep = packed["b_out_p"].shape[-1]
    n_chunks = Tp // Tt
    needs_mask = (valid_T != Tp)

    # Tile the pre-broadcast (8, .) biases up to Bp rows if the batch pad > 8.
    def tile_bias(b):
        reps = [1] * b.ndim
        reps[-2] = Bp // b.shape[-2]
        return jnp.tile(b, reps) if reps[-2] > 1 else b

    b_in_p = tile_bias(packed["b_in_p"])
    b_ih_p = tile_bias(packed["b_ih_p"])
    b_hh_p = tile_bias(packed["b_hh_p"])
    b_out_p = tile_bias(packed["b_out_p"])

    grid_spec = pltpu.PrefetchScalarGridSpec(
        num_scalar_prefetch=0,
        grid=(n_chunks,),
        in_specs=[
            pl.BlockSpec((Tt, Bp, CDp), lambda c: (c, 0, 0)),  # streamed concat (bf16)
            _resident_spec(packed["w_in_p"].shape),            # weights & biases
            _resident_spec(b_in_p.shape),                      # stay VMEM-resident
            _resident_spec(packed["w_ih_p"].shape),            # across all chunks
            _resident_spec(b_ih_p.shape),
            _resident_spec(packed["w_hh_p"].shape),
            _resident_spec(b_hh_p.shape),
            _resident_spec((L, Bp, Hp)),                       # h0 (read at chunk 0)
            _resident_spec(packed["w_out_p"].shape),
            _resident_spec(b_out_p.shape),
        ],
        out_specs=(
            pl.BlockSpec((Tt, Bp, Ep), lambda c: (c, 0, 0)),   # per-chunk logits
            _resident_spec((L, Bp, Hp)),                       # resident hidden carry
        ),
        scratch_shapes=[
            pltpu.VMEM((Tt, Bp, Hp), jnp.float32),             # batched x (input FC)
            pltpu.VMEM((Tt, Bp, 3 * Hp), jnp.float32),         # batched layer-0 gates
            pltpu.VMEM((L, Tt, Bp, Hp), jnp.float32),          # hidden history
        ],
    )

    kernel = functools.partial(performance_rnn_kernel,
                               valid_T=valid_T, needs_mask=needs_mask)

    out_seq, h_new = pl.pallas_call(
        kernel,
        grid_spec=grid_spec,
        out_shape=(jax.ShapeDtypeStruct((Tp, Bp, Ep), jnp.float32),
                   jax.ShapeDtypeStruct((L, Bp, Hp), jnp.float32)),
        input_output_aliases={7: 1},                           # hidden -> new hidden
        compiler_params=pltpu.CompilerParams(
            dimension_semantics=("arbitrary",),                # time axis is serial
            vmem_limit_bytes=_vmem_limit_bytes(packed, Tt, Bp, CDp, Hp, Ep, L)),
    )(concat_p, packed["w_in_p"], b_in_p, packed["w_ih_p"], b_ih_p,
      packed["w_hh_p"], b_hh_p, hidden_p, packed["w_out_p"], b_out_p)
    return out_seq, h_new


def performance_rnn_forward_steps(params, events, controls=None, hidden=None,
                                  time_chunk=16):
    """Run T chained forward() steps inside ONE pallas_call (time-chunked grid).

    events: (T, B) int32; controls: None or (T, B, C); hidden: None or (L, B, H).
    Returns (logits (T, B, E), final hidden (L, B, H)).
    """
    T, B = events.shape
    E, H, L = params["event_dim"], params["hidden_dim"], params["gru_layers"]
    packed = params["packed"]
    CDp, Hp = packed["w_in_p"].shape
    Bp = _round_up(B, 8)

    Tt = max(1, min(int(time_chunk), T))
    n_chunks = -(-T // Tt)
    Tp = n_chunks * Tt                                       # zero-padded tail (masked)

    concat = _build_concat(params, events, controls)         # (T, B, CD) f32
    concat_p = jnp.zeros((Tp, Bp, CDp), jnp.bfloat16) \
        .at[:T, :B, :concat.shape[-1]].set(concat.astype(jnp.bfloat16))
    if hidden is None:
        hidden = jnp.zeros((L, B, H), jnp.float32)
    hidden_p = jnp.zeros((L, Bp, Hp), jnp.float32).at[:, :B, :H].set(hidden)

    out_seq_p, h_new_p = _call_kernel(packed, concat_p, hidden_p, Tt, T)
    return out_seq_p[:T, :B, :E], h_new_p[:, :B, :H]


def performance_rnn_forward(params, event, control=None, hidden=None):
    """Single-step forward matching PyTorch PerformanceRNN.forward.

    event: (1, B) int32; control: None or (1, B, C); hidden: None or (L, B, H).
    Returns (output (1, B, E), hidden (L, B, H)).
    """
    assert event.ndim == 2 and event.shape[0] == 1
    return performance_rnn_forward_steps(params, event, control, hidden,
                                         time_chunk=1)


# ----------------------------------------------------------------------------
# Pure-JAX reference (same bf16-weight / f32-accumulation numerics)
# ----------------------------------------------------------------------------
def _bdot(a, w):
    return jnp.dot(a.astype(jnp.bfloat16), w.astype(jnp.bfloat16),
                   preferred_element_type=jnp.float32)


def _reference_forward(params, event, control=None, hidden=None):
    E, H, L = params["event_dim"], params["hidden_dim"], params["gru_layers"]
    B = event.shape[1]
    concat = _build_concat(params, event, control)[0]        # (B, CD)
    if hidden is None:
        hidden = jnp.zeros((L, B, H), jnp.float32)

    x = _bdot(concat, params["w_in_t"]) + params["b_in"]
    x = jnp.where(x > 0, x, 0.1 * x)
    hs = []
    for l in range(L):
        h = hidden[l]
        gx = _bdot(x, params["w_ih_t"][l]) + params["b_ih"][l]
        gh = _bdot(h, params["w_hh_t"][l]) + params["b_hh"][l]
        r = jax.nn.sigmoid(gx[:, :H] + gh[:, :H])
        z = jax.nn.sigmoid(gx[:, H:2 * H] + gh[:, H:2 * H])
        n = jnp.tanh(gx[:, 2 * H:] + r * gh[:, 2 * H:])
        h = (1 - z) * n + z * h
        hs.append(h)
        x = h
    out = jnp.zeros((B, E), jnp.float32)
    for l in range(L):
        out = out + _bdot(hs[l], params["w_out_t"][l * H:(l + 1) * H])
    out = out + params["b_out"]
    return out[None], jnp.stack(hs)


def _reference_steps(params, events, controls=None, hidden=None):
    T = events.shape[0]
    outs = []
    for t in range(T):
        ctl_t = None if controls is None else controls[t:t + 1]
        out, hidden = _reference_forward(params, events[t:t + 1], ctl_t, hidden)
        outs.append(out)
    return jnp.concatenate(outs, 0), hidden


# ----------------------------------------------------------------------------
if __name__ == "__main__":
    event_dim, control_dim, init_dim, hidden_dim, gru_layers = 64, 15, 32, 32, 3
    B, T = 4, 8

    key = jax.random.PRNGKey(0)
    k_params, k_event, k_events, k_ctrl, k_hidden, k_events2 = jax.random.split(key, 6)

    params = init_params(k_params, event_dim, control_dim, hidden_dim, gru_layers)

    # hidden as produced by inithid_fc + tanh (values in (-1, 1))
    hidden = jnp.tanh(jax.random.normal(k_hidden, (gru_layers, B, hidden_dim),
                                        jnp.float32))

    # --- single-step forward(), control=None (exact torch forward semantics) ---
    event = jax.random.randint(k_event, (1, B), 0, event_dim, dtype=jnp.int32)
    out, h1 = performance_rnn_forward(params, event, control=None, hidden=hidden)
    out = jax.block_until_ready(out)
    h1 = jax.block_until_ready(h1)
    ref_out, ref_h1 = _reference_forward(params, event, None, hidden)
    assert out.shape == (1, B, event_dim) and h1.shape == (gru_layers, B, hidden_dim)
    assert jnp.allclose(out, ref_out, atol=1e-3, rtol=1e-3)
    assert jnp.allclose(h1, ref_h1, atol=1e-3, rtol=1e-3)

    # --- T chained steps in ONE grid step (whole sequence fits one time chunk) ---
    events = jax.random.randint(k_events, (T, B), 0, event_dim, dtype=jnp.int32)
    controls = jax.random.uniform(k_ctrl, (T, B, control_dim), jnp.float32)
    out_seq, hT = performance_rnn_forward_steps(params, events, controls, hidden,
                                                time_chunk=16)
    out_seq = jax.block_until_ready(out_seq)
    hT = jax.block_until_ready(hT)
    ref_seq, ref_hT = _reference_steps(params, events, controls, hidden)
    assert out_seq.shape == (T, B, event_dim) and hT.shape == (gru_layers, B, hidden_dim)
    assert jnp.allclose(out_seq, ref_seq, atol=2e-3, rtol=2e-3)
    assert jnp.allclose(hT, ref_hT, atol=2e-3, rtol=2e-3)

    # --- T not divisible by the time chunk: exercises zero-pad + mask path ---
    T2 = 11
    events2 = jax.random.randint(k_events2, (T2, B), 0, event_dim, dtype=jnp.int32)
    out_seq2, hT2 = performance_rnn_forward_steps(params, events2, None, hidden,
                                                  time_chunk=4)
    out_seq2 = jax.block_until_ready(out_seq2)
    hT2 = jax.block_until_ready(hT2)
    ref_seq2, ref_hT2 = _reference_steps(params, events2, None, hidden)
    assert out_seq2.shape == (T2, B, event_dim)
    assert jnp.allclose(out_seq2, ref_seq2, atol=5e-3, rtol=5e-3)
    assert jnp.allclose(hT2, ref_hT2, atol=5e-3, rtol=5e-3)

    print("KERNEL_OK")
</pallas_src>

<mosaic_0001>
module attributes {stable_mosaic.version = 11 : i64} {
  func.func @performance_rnn_kernel(%arg0: i32, %arg1: memref<1x8x128xbf16, #tpu.memory_space<vmem>>, %arg2: memref<128x128xbf16, #tpu.memory_space<vmem>>, %arg3: memref<8x128xf32, #tpu.memory_space<vmem>>, %arg4: memref<3x128x384xbf16, #tpu.memory_space<vmem>>, %arg5: memref<3x8x384xf32, #tpu.memory_space<vmem>>, %arg6: memref<3x128x384xbf16, #tpu.memory_space<vmem>>, %arg7: memref<3x8x384xf32, #tpu.memory_space<vmem>>, %arg8: memref<3x8x128xf32, #tpu.memory_space<vmem>>, %arg9: memref<3x128x128xbf16, #tpu.memory_space<vmem>>, %arg10: memref<8x128xf32, #tpu.memory_space<vmem>>, %arg11: memref<1x8x128xf32, #tpu.memory_space<vmem>>, %arg12: memref<3x8x128xf32, #tpu.memory_space<vmem>>, %arg13: memref<1x8x128xf32, #tpu.memory_space<vmem>>, %arg14: memref<1x8x384xf32, #tpu.memory_space<vmem>>, %arg15: memref<3x1x8x128xf32, #tpu.memory_space<vmem>>) attributes {dimension_semantics = [#tpu.dimension_semantics<arbitrary>], iteration_bounds = array<i64: 1>, scalar_prefetch = 0 : i64, scratch_operands = 3 : i64, tpu.core_type = #tpu.core_type<tc>, window_params = [{transform_indices = @transform_0, window_bounds = array<i64: 1, 8, 128>}, {pipeline_mode = #tpu.pipeline_mode<synchronous>, transform_indices = @transform_1, window_bounds = array<i64: 128, 128>}, {pipeline_mode = #tpu.pipeline_mode<synchronous>, transform_indices = @transform_2, window_bounds = array<i64: 8, 128>}, {pipeline_mode = #tpu.pipeline_mode<synchronous>, transform_indices = @transform_3, window_bounds = array<i64: 3, 128, 384>}, {pipeline_mode = #tpu.pipeline_mode<synchronous>, transform_indices = @transform_4, window_bounds = array<i64: 3, 8, 384>}, {pipeline_mode = #tpu.pipeline_mode<synchronous>, transform_indices = @transform_5, window_bounds = array<i64: 3, 128, 384>}, {pipeline_mode = #tpu.pipeline_mode<synchronous>, transform_indices = @transform_6, window_bounds = array<i64: 3, 8, 384>}, {pipeline_mode = #tpu.pipeline_mode<synchronous>, transform_indices = @transform_7, window_bounds = array<i64: 3, 8, 128>}, {pipeline_mode = #tpu.pipeline_mode<synchronous>, transform_indices = @transform_8, window_bounds = array<i64: 3, 128, 128>}, {pipeline_mode = #tpu.pipeline_mode<synchronous>, transform_indices = @transform_9, window_bounds = array<i64: 8, 128>}, {transform_indices = @transform_10, window_bounds = array<i64: 1, 8, 128>}, {pipeline_mode = #tpu.pipeline_mode<synchronous>, transform_indices = @transform_11, window_bounds = array<i64: 3, 8, 128>}]} {
    %c0_i32 = arith.constant 0 : i32
    %0 = arith.cmpi eq, %arg0, %c0_i32 : i32
    %1 = arith.extui %0 : i1 to i32
    %c0_i32_0 = arith.constant 0 : i32
    %2 = arith.cmpi ne, %1, %c0_i32_0 : i32
    scf.if %2 {
      %c0_126 = arith.constant 0 : index
      %c0_127 = arith.constant 0 : index
      %c0_128 = arith.constant 0 : index
      %195 = vector.load %arg8[%c0_126, %c0_127, %c0_128] : memref<3x8x128xf32, #tpu.memory_space<vmem>>, vector<3x8x128xf32>
      %c0_129 = arith.constant 0 : index
      %c0_130 = arith.constant 0 : index
      %c0_131 = arith.constant 0 : index
      %196 = vector.load %arg12[%c0_129, %c0_130, %c0_131] : memref<3x8x128xf32, #tpu.memory_space<vmem>>, vector<3x8x128xf32>
      tpu.vector_store %arg12[%c0_129, %c0_130, %c0_131], %195 {strides = array<i32>} : memref<3x8x128xf32, #tpu.memory_space<vmem>>, vector<3x8x128xf32>,
    } else {
    }
    %c0 = arith.constant 0 : index
    %c0_1 = arith.constant 0 : index
    %c0_2 = arith.constant 0 : index
    %3 = vector.load %arg1[%c0, %c0_1, %c0_2] : memref<1x8x128xbf16, #tpu.memory_space<vmem>>, vector<1x8x128xbf16>
    %4 = vector.shape_cast %3 : vector<1x8x128xbf16> to vector<8x128xbf16>
    %c0_3 = arith.constant 0 : index
    %c0_4 = arith.constant 0 : index
    %5 = vector.load %arg2[%c0_3, %c0_4] : memref<128x128xbf16, #tpu.memory_space<vmem>>, vector<128x128xbf16>
    %cst = arith.constant dense<0.000000e+00> : vector<8x128xf32>
    %6 = tpu.matmul %4, %5, %cst {dimension_numbers = #tpu.dot_dimension_numbers<[1], [0], [0], [1], [0, 0, 1, 1], [], []>} : vector<8x128xbf16>, vector<128x128xbf16>, vector<8x128xf32> -> vector<8x128xf32>
    %7 = vector.shape_cast %6 : vector<8x128xf32> to vector<1x8x128xf32>
    %c0_5 = arith.constant 0 : index
    %c0_6 = arith.constant 0 : index
    %8 = vector.load %arg3[%c0_5, %c0_6] : memref<8x128xf32, #tpu.memory_space<vmem>>, vector<8x128xf32>
    %9 = vector.shape_cast %8 : vector<8x128xf32> to vector<1x8x128xf32>
    %10 = arith.addf %7, %9 : vector<1x8x128xf32>
    %cst_7 = arith.constant 0.000000e+00 : f32
    %11 = vector.broadcast %cst_7 : f32 to vector<1x8x128xf32>
    %12 = arith.cmpf ogt, %10, %11 : vector<1x8x128xf32>
    %cst_8 = arith.constant 1.000000e-01 : f32
    %13 = vector.broadcast %cst_8 : f32 to vector<1x8x128xf32>
    %14 = arith.mulf %13, %10 : vector<1x8x128xf32>
    %15 = arith.select %12, %10, %14 : vector<1x8x128xi1>, vector<1x8x128xf32>
    %c0_9 = arith.constant 0 : index
    %c0_10 = arith.constant 0 : index
    %c0_11 = arith.constant 0 : index
    %16 = vector.load %arg13[%c0_9, %c0_10, %c0_11] : memref<1x8x128xf32, #tpu.memory_space<vmem>>, vector<1x8x128xf32>
    tpu.vector_store %arg13[%c0_9, %c0_10, %c0_11], %15 {strides = array<i32>} : memref<1x8x128xf32, #tpu.memory_space<vmem>>, vector<1x8x128xf32>,
    %17 = vector.shape_cast %15 : vector<1x8x128xf32> to vector<8x128xf32>
    %18 = arith.truncf %17 : vector<8x128xf32> to vector<8x128xbf16>
    %c0_12 = arith.constant 0 : index
    %c0_13 = arith.constant 0 : index
    %c0_14 = arith.constant 0 : index
    %19 = vector.load %arg4[%c0_12, %c0_13, %c0_14] : memref<3x128x384xbf16, #tpu.memory_space<vmem>>, vector<1x128x384xbf16>
    %20 = vector.shape_cast %19 : vector<1x128x384xbf16> to vector<128x384xbf16>
    %cst_15 = arith.constant dense<0.000000e+00> : vector<8x384xf32>
    %21 = tpu.matmul %18, %20, %cst_15 {dimension_numbers = #tpu.dot_dimension_numbers<[1], [0], [0], [1], [0, 0, 1, 1], [], []>} : vector<8x128xbf16>, vector<128x384xbf16>, vector<8x384xf32> -> vector<8x384xf32>
    %22 = vector.shape_cast %21 : vector<8x384xf32> to vector<1x8x384xf32>
    %c0_16 = arith.constant 0 : index
    %c0_17 = arith.constant 0 : index
    %c0_18 = arith.constant 0 : index
    %23 = vector.load %arg5[%c0_16, %c0_17, %c0_18] : memref<3x8x384xf32, #tpu.memory_space<vmem>>, vector<1x8x384xf32>
    %24 = vector.shape_cast %23 : vector<1x8x384xf32> to vector<8x384xf32>
    %25 = vector.shape_cast %24 : vector<8x384xf32> to vector<1x8x384xf32>
    %26 = arith.addf %22, %25 : vector<1x8x384xf32>
    %c0_19 = arith.constant 0 : index
    %c0_20 = arith.constant 0 : index
    %c0_21 = arith.constant 0 : index
    %27 = vector.load %arg14[%c0_19, %c0_20, %c0_21] : memref<1x8x384xf32, #tpu.memory_space<vmem>>, vector<1x8x384xf32>
    tpu.vector_store %arg14[%c0_19, %c0_20, %c0_21], %26 {strides = array<i32>} : memref<1x8x384xf32, #tpu.memory_space<vmem>>, vector<1x8x384xf32>,
    %c0_22 = arith.constant 0 : index
    %c0_23 = arith.constant 0 : index
    %c0_24 = arith.constant 0 : index
    %28 = vector.load %arg12[%c0_22, %c0_23, %c0_24] : memref<3x8x128xf32, #tpu.memory_space<vmem>>, vector<1x8x128xf32>
    %29 = vector.shape_cast %28 : vector<1x8x128xf32> to vector<8x128xf32>
    %c1 = arith.constant 1 : index
    %c0_25 = arith.constant 0 : index
    %c0_26 = arith.constant 0 : index
    %30 = vector.load %arg12[%c1, %c0_25, %c0_26] : memref<3x8x128xf32, #tpu.memory_space<vmem>>, vector<1x8x128xf32>
    %31 = vector.shape_cast %30 : vector<1x8x128xf32> to vector<8x128xf32>
    %c2 = arith.constant 2 : index
    %c0_27 = arith.constant 0 : index
    %c0_28 = arith.constant 0 : index
    %32 = vector.load %arg12[%c2, %c0_27, %c0_28] : memref<3x8x128xf32, #tpu.memory_space<vmem>>, vector<1x8x128xf32>
    %33 = vector.shape_cast %32 : vector<1x8x128xf32> to vector<8x128xf32>
    %34 = arith.truncf %29 : vector<8x128xf32> to vector<8x128xbf16>
    %c0_29 = arith.constant 0 : index
    %c0_30 = arith.constant 0 : index
    %c0_31 = arith.constant 0 : index
    %35 = vector.load %arg6[%c0_29, %c0_30, %c0_31] : memref<3x128x384xbf16, #tpu.memory_space<vmem>>, vector<1x128x384xbf16>
    %36 = vector.shape_cast %35 : vector<1x128x384xbf16> to vector<128x384xbf16>
    %cst_32 = arith.constant dense<0.000000e+00> : vector<8x384xf32>
    %37 = tpu.matmul %34, %36, %cst_32 {dimension_numbers = #tpu.dot_dimension_numbers<[1], [0], [0], [1], [0, 0, 1, 1], [], []>} : vector<8x128xbf16>, vector<128x384xbf16>, vector<8x384xf32> -> vector<8x384xf32>
    %c0_33 = arith.constant 0 : index
    %c0_34 = arith.constant 0 : index
    %c0_35 = arith.constant 0 : index
    %38 = vector.load %arg7[%c0_33, %c0_34, %c0_35] : memref<3x8x384xf32, #tpu.memory_space<vmem>>, vector<1x8x384xf32>
    %39 = vector.shape_cast %38 : vector<1x8x384xf32> to vector<8x384xf32>
    %40 = arith.addf %37, %39 : vector<8x384xf32>
    %41 = arith.truncf %31 : vector<8x128xf32> to vector<8x128xbf16>
    %c1_36 = arith.constant 1 : index
    %c0_37 = arith.constant 0 : index
    %c0_38 = arith.constant 0 : index
    %42 = vector.load %arg6[%c1_36, %c0_37, %c0_38] : memref<3x128x384xbf16, #tpu.memory_space<vmem>>, vector<1x128x384xbf16>
    %43 = vector.shape_cast %42 : vector<1x128x384xbf16> to vector<128x384xbf16>
    %cst_39 = arith.constant dense<0.000000e+00> : vector<8x384xf32>
    %44 = tpu.matmul %41, %43, %cst_39 {dimension_numbers = #tpu.dot_dimension_numbers<[1], [0], [0], [1], [0, 0, 1, 1], [], []>} : vector<8x128xbf16>, vector<128x384xbf16>, vector<8x384xf32> -> vector<8x384xf32>
    %c1_40 = arith.constant 1 : index
    %c0_41 = arith.constant 0 : index
    %c0_42 = arith.constant 0 : index
    %45 = vector.load %arg7[%c1_40, %c0_41, %c0_42] : memref<3x8x384xf32, #tpu.memory_space<vmem>>, vector<1x8x384xf32>
    %46 = vector.shape_cast %45 : vector<1x8x384xf32> to vector<8x384xf32>
    %47 = arith.addf %44, %46 : vector<8x384xf32>
    %48 = arith.truncf %33 : vector<8x128xf32> to vector<8x128xbf16>
    %c2_43 = arith.constant 2 : index
    %c0_44 = arith.constant 0 : index
    %c0_45 = arith.constant 0 : index
    %49 = vector.load %arg6[%c2_43, %c0_44, %c0_45] : memref<3x128x384xbf16, #tpu.memory_space<vmem>>, vector<1x128x384xbf16>
    %50 = vector.shape_cast %49 : vector<1x128x384xbf16> to vector<128x384xbf16>
    %cst_46 = arith.constant dense<0.000000e+00> : vector<8x384xf32>
    %51 = tpu.matmul %48, %50, %cst_46 {dimension_numbers = #tpu.dot_dimension_numbers<[1], [0], [0], [1], [0, 0, 1, 1], [], []>} : vector<8x128xbf16>, vector<128x384xbf16>, vector<8x384xf32> -> vector<8x384xf32>
    %c2_47 = arith.constant 2 : index
    %c0_48 = arith.constant 0 : index
    %c0_49 = arith.constant 0 : index
    %52 = vector.load %arg7[%c2_47, %c0_48, %c0_49] : memref<3x8x384xf32, #tpu.memory_space<vmem>>, vector<1x8x384xf32>
    %53 = vector.shape_cast %52 : vector<1x8x384xf32> to vector<8x384xf32>
    %54 = arith.addf %51, %53 : vector<8x384xf32>
    %c0_50 = arith.constant 0 : index
    %c0_51 = arith.constant 0 : index
    %c0_52 = arith.constant 0 : index
    %55 = vector.load %arg14[%c0_50, %c0_51, %c0_52] : memref<1x8x384xf32, #tpu.memory_space<vmem>>, vector<1x8x384xf32>
    %56 = vector.shape_cast %55 : vector<1x8x384xf32> to vector<8x384xf32>
    %57 = vector.extract_strided_slice %56 {offsets = [0, 0], sizes = [8, 128], strides = [1, 1]} : vector<8x384xf32> to vector<8x128xf32>
    %58 = vector.extract_strided_slice %40 {offsets = [0, 0], sizes = [8, 128], strides = [1, 1]} : vector<8x384xf32> to vector<8x128xf32>
    %59 = arith.addf %57, %58 : vector<8x128xf32>
    %60 = arith.negf %59 : vector<8x128xf32>
    %61 = math.exp %60 : vector<8x128xf32>
    %cst_53 = arith.constant 1.000000e+00 : f32
    %62 = vector.broadcast %cst_53 : f32 to vector<8x128xf32>
    %63 = arith.addf %62, %61 : vector<8x128xf32>
    %64 = arith.divf %62, %63 : vector<8x128xf32>
    %65 = vector.extract_strided_slice %56 {offsets = [0, 128], sizes = [8, 128], strides = [1, 1]} : vector<8x384xf32> to vector<8x128xf32>
    %66 = vector.extract_strided_slice %40 {offsets = [0, 128], sizes = [8, 128], strides = [1, 1]} : vector<8x384xf32> to vector<8x128xf32>
    %67 = arith.addf %65, %66 : vector<8x128xf32>
    %68 = arith.negf %67 : vector<8x128xf32>
    %69 = math.exp %68 : vector<8x128xf32>
    %cst_54 = arith.constant 1.000000e+00 : f32
    %70 = vector.broadcast %cst_54 : f32 to vector<8x128xf32>
    %71 = arith.addf %70, %69 : vector<8x128xf32>
    %72 = arith.divf %70, %71 : vector<8x128xf32>
    %73 = vector.extract_strided_slice %56 {offsets = [0, 256], sizes = [8, 128], strides = [1, 1]} : vector<8x384xf32> to vector<8x128xf32>
    %74 = vector.extract_strided_slice %40 {offsets = [0, 256], sizes = [8, 128], strides = [1, 1]} : vector<8x384xf32> to vector<8x128xf32>
    %75 = arith.mulf %64, %74 : vector<8x128xf32>
    %76 = arith.addf %73, %75 : vector<8x128xf32>
    %77 = math.tanh %76 : vector<8x128xf32>
    %cst_55 = arith.constant 1.000000e+00 : f32
    %78 = vector.broadcast %cst_55 : f32 to vector<8x128xf32>
    %79 = arith.subf %78, %72 : vector<8x128xf32>
    %80 = arith.mulf %79, %77 : vector<8x128xf32>
    %81 = arith.mulf %72, %29 : vector<8x128xf32>
    %82 = arith.addf %80, %81 : vector<8x128xf32>
    %c0_56 = arith.constant 0 : index
    %c0_57 = arith.constant 0 : index
    %c0_58 = arith.constant 0 : index
    %c0_59 = arith.constant 0 : index
    %83 = vector.load %arg15[%c0_56, %c0_57, %c0_58, %c0_59] : memref<3x1x8x128xf32, #tpu.memory_space<vmem>>, vector<1x1x8x128xf32>
    %84 = vector.shape_cast %83 : vector<1x1x8x128xf32> to vector<8x128xf32>
    %85 = vector.shape_cast %82 : vector<8x128xf32> to vector<1x1x8x128xf32>
    tpu.vector_store %arg15[%c0_56, %c0_57, %c0_58, %c0_59], %85 {strides = array<i32>} : memref<3x1x8x128xf32, #tpu.memory_space<vmem>>, vector<1x1x8x128xf32>,
    %86 = arith.truncf %82 : vector<8x128xf32> to vector<8x128xbf16>
    %c1_60 = arith.constant 1 : index
    %c0_61 = arith.constant 0 : index
    %c0_62 = arith.constant 0 : index
    %87 = vector.load %arg4[%c1_60, %c0_61, %c0_62] : memref<3x128x384xbf16, #tpu.memory_space<vmem>>, vector<1x128x384xbf16>
    %88 = vector.shape_cast %87 : vector<1x128x384xbf16> to vector<128x384xbf16>
    %cst_63 = arith.constant dense<0.000000e+00> : vector<8x384xf32>
    %89 = tpu.matmul %86, %88, %cst_63 {dimension_numbers = #tpu.dot_dimension_numbers<[1], [0], [0], [1], [0, 0, 1, 1], [], []>} : vector<8x128xbf16>, vector<128x384xbf16>, vector<8x384xf32> -> vector<8x384xf32>
    %c1_64 = arith.constant 1 : index
    %c0_65 = arith.constant 0 : index
    %c0_66 = arith.constant 0 : index
    %90 = vector.load %arg5[%c1_64, %c0_65, %c0_66] : memref<3x8x384xf32, #tpu.memory_space<vmem>>, vector<1x8x384xf32>
    %91 = vector.shape_cast %90 : vector<1x8x384xf32> to vector<8x384xf32>
    %92 = arith.addf %89, %91 : vector<8x384xf32>
    %93 = vector.extract_strided_slice %92 {offsets = [0, 0], sizes = [8, 128], strides = [1, 1]} : vector<8x384xf32> to vector<8x128xf32>
    %94 = vector.extract_strided_slice %47 {offsets = [0, 0], sizes = [8, 128], strides = [1, 1]} : vector<8x384xf32> to vector<8x128xf32>
    %95 = arith.addf %93, %94 : vector<8x128xf32>
    %96 = arith.negf %95 : vector<8x128xf32>
    %97 = math.exp %96 : vector<8x128xf32>
    %cst_67 = arith.constant 1.000000e+00 : f32
    %98 = vector.broadcast %cst_67 : f32 to vector<8x128xf32>
    %99 = arith.addf %98, %97 : vector<8x128xf32>
    %100 = arith.divf %98, %99 : vector<8x128xf32>
    %101 = vector.extract_strided_slice %92 {offsets = [0, 128], sizes = [8, 128], strides = [1, 1]} : vector<8x384xf32> to vector<8x128xf32>
    %102 = vector.extract_strided_slice %47 {offsets = [0, 128], sizes = [8, 128], strides = [1, 1]} : vector<8x384xf32> to vector<8x128xf32>
    %103 = arith.addf %101, %102 : vector<8x128xf32>
    %104 = arith.negf %103 : vector<8x128xf32>
    %105 = math.exp %104 : vector<8x128xf32>
    %cst_68 = arith.constant 1.000000e+00 : f32
    %106 = vector.broadcast %cst_68 : f32 to vector<8x128xf32>
    %107 = arith.addf %106, %105 : vector<8x128xf32>
    %108 = arith.divf %106, %107 : vector<8x128xf32>
    %109 = vector.extract_strided_slice %92 {offsets = [0, 256], sizes = [8, 128], strides = [1, 1]} : vector<8x384xf32> to vector<8x128xf32>
    %110 = vector.extract_strided_slice %47 {offsets = [0, 256], sizes = [8, 128], strides = [1, 1]} : vector<8x384xf32> to vector<8x128xf32>
    %111 = arith.mulf %100, %110 : vector<8x128xf32>
    %112 = arith.addf %109, %111 : vector<8x128xf32>
    %113 = math.tanh %112 : vector<8x128xf32>
    %cst_69 = arith.constant 1.000000e+00 : f32
    %114 = vector.broadcast %cst_69 : f32 to vector<8x128xf32>
    %115 = arith.subf %114, %108 : vector<8x128xf32>
    %116 = arith.mulf %115, %113 : vector<8x128xf32>
    %117 = arith.mulf %108, %31 : vector<8x128xf32>
    %118 = arith.addf %116, %117 : vector<8x128xf32>
    %c1_70 = arith.constant 1 : index
    %c0_71 = arith.constant 0 : index
    %c0_72 = arith.constant 0 : index
    %c0_73 = arith.constant 0 : index
    %119 = vector.load %arg15[%c1_70, %c0_71, %c0_72, %c0_73] : memref<3x1x8x128xf32, #tpu.memory_space<vmem>>, vector<1x1x8x128xf32>
    %120 = vector.shape_cast %119 : vector<1x1x8x128xf32> to vector<8x128xf32>
    %121 = vector.shape_cast %118 : vector<8x128xf32> to vector<1x1x8x128xf32>
    tpu.vector_store %arg15[%c1_70, %c0_71, %c0_72, %c0_73], %121 {strides = array<i32>} : memref<3x1x8x128xf32, #tpu.memory_space<vmem>>, vector<1x1x8x128xf32>,
    %122 = arith.truncf %118 : vector<8x128xf32> to vector<8x128xbf16>
    %c2_74 = arith.constant 2 : index
    %c0_75 = arith.constant 0 : index
    %c0_76 = arith.constant 0 : index
    %123 = vector.load %arg4[%c2_74, %c0_75, %c0_76] : memref<3x128x384xbf16, #tpu.memory_space<vmem>>, vector<1x128x384xbf16>
    %124 = vector.shape_cast %123 : vector<1x128x384xbf16> to vector<128x384xbf16>
    %cst_77 = arith.constant dense<0.000000e+00> : vector<8x384xf32>
    %125 = tpu.matmul %122, %124, %cst_77 {dimension_numbers = #tpu.dot_dimension_numbers<[1], [0], [0], [1], [0, 0, 1, 1], [], []>} : vector<8x128xbf16>, vector<128x384xbf16>, vector<8x384xf32> -> vector<8x384xf32>
    %c2_78 = arith.constant 2 : index
    %c0_79 = arith.constant 0 : index
    %c0_80 = arith.constant 0 : index
    %126 = vector.load %arg5[%c2_78, %c0_79, %c0_80] : memref<3x8x384xf32, #tpu.memory_space<vmem>>, vector<1x8x384xf32>
    %127 = vector.shape_cast %126 : vector<1x8x384xf32> to vector<8x384xf32>
    %128 = arith.addf %125, %127 : vector<8x384xf32>
    %129 = vector.extract_strided_slice %128 {offsets = [0, 0], sizes = [8, 128], strides = [1, 1]} : vector<8x384xf32> to vector<8x128xf32>
    %130 = vector.extract_strided_slice %54 {offsets = [0, 0], sizes = [8, 128], strides = [1, 1]} : vector<8x384xf32> to vector<8x128xf32>
    %131 = arith.addf %129, %130 : vector<8x128xf32>
    %132 = arith.negf %131 : vector<8x128xf32>
    %133 = math.exp %132 : vector<8x128xf32>
    %cst_81 = arith.constant 1.000000e+00 : f32
    %134 = vector.broadcast %cst_81 : f32 to vector<8x128xf32>
    %135 = arith.addf %134, %133 : vector<8x128xf32>
    %136 = arith.divf %134, %135 : vector<8x128xf32>
    %137 = vector.extract_strided_slice %128 {offsets = [0, 128], sizes = [8, 128], strides = [1, 1]} : vector<8x384xf32> to vector<8x128xf32>
    %138 = vector.extract_strided_slice %54 {offsets = [0, 128], sizes = [8, 128], strides = [1, 1]} : vector<8x384xf32> to vector<8x128xf32>
    %139 = arith.addf %137, %138 : vector<8x128xf32>
    %140 = arith.negf %139 : vector<8x128xf32>
    %141 = math.exp %140 : vector<8x128xf32>
    %cst_82 = arith.constant 1.000000e+00 : f32
    %142 = vector.broadcast %cst_82 : f32 to vector<8x128xf32>
    %143 = arith.addf %142, %141 : vector<8x128xf32>
    %144 = arith.divf %142, %143 : vector<8x128xf32>
    %145 = vector.extract_strided_slice %128 {offsets = [0, 256], sizes = [8, 128], strides = [1, 1]} : vector<8x384xf32> to vector<8x128xf32>
    %146 = vector.extract_strided_slice %54 {offsets = [0, 256], sizes = [8, 128], strides = [1, 1]} : vector<8x384xf32> to vector<8x128xf32>
    %147 = arith.mulf %136, %146 : vector<8x128xf32>
    %148 = arith.addf %145, %147 : vector<8x128xf32>
    %149 = math.tanh %148 : vector<8x128xf32>
    %cst_83 = arith.constant 1.000000e+00 : f32
    %150 = vector.broadcast %cst_83 : f32 to vector<8x128xf32>
    %151 = arith.subf %150, %144 : vector<8x128xf32>
    %152 = arith.mulf %151, %149 : vector<8x128xf32>
    %153 = arith.mulf %144, %33 : vector<8x128xf32>
    %154 = arith.addf %152, %153 : vector<8x128xf32>
    %c2_84 = arith.constant 2 : index
    %c0_85 = arith.constant 0 : index
    %c0_86 = arith.constant 0 : index
    %c0_87 = arith.constant 0 : index
    %155 = vector.load %arg15[%c2_84, %c0_85, %c0_86, %c0_87] : memref<3x1x8x128xf32, #tpu.memory_space<vmem>>, vector<1x1x8x128xf32>
    %156 = vector.shape_cast %155 : vector<1x1x8x128xf32> to vector<8x128xf32>
    %157 = vector.shape_cast %154 : vector<8x128xf32> to vector<1x1x8x128xf32>
    tpu.vector_store %arg15[%c2_84, %c0_85, %c0_86, %c0_87], %157 {strides = array<i32>} : memref<3x1x8x128xf32, #tpu.memory_space<vmem>>, vector<1x1x8x128xf32>,
    %c0_88 = arith.constant 0 : index
    %c0_89 = arith.constant 0 : index
    %c0_90 = arith.constant 0 : index
    %158 = vector.load %arg12[%c0_88, %c0_89, %c0_90] : memref<3x8x128xf32, #tpu.memory_space<vmem>>, vector<1x8x128xf32>
    %159 = vector.shape_cast %158 : vector<1x8x128xf32> to vector<8x128xf32>
    %160 = vector.shape_cast %82 : vector<8x128xf32> to vector<1x8x128xf32>
    tpu.vector_store %arg12[%c0_88, %c0_89, %c0_90], %160 {strides = array<i32>} : memref<3x8x128xf32, #tpu.memory_space<vmem>>, vector<1x8x128xf32>,
    %c1_91 = arith.constant 1 : index
    %c0_92 = arith.constant 0 : index
    %c0_93 = arith.constant 0 : index
    %161 = vector.load %arg12[%c1_91, %c0_92, %c0_93] : memref<3x8x128xf32, #tpu.memory_space<vmem>>, vector<1x8x128xf32>
    %162 = vector.shape_cast %161 : vector<1x8x128xf32> to vector<8x128xf32>
    %163 = vector.shape_cast %118 : vector<8x128xf32> to vector<1x8x128xf32>
    tpu.vector_store %arg12[%c1_91, %c0_92, %c0_93], %163 {strides = array<i32>} : memref<3x8x128xf32, #tpu.memory_space<vmem>>, vector<1x8x128xf32>,
    %c2_94 = arith.constant 2 : index
    %c0_95 = arith.constant 0 : index
    %c0_96 = arith.constant 0 : index
    %164 = vector.load %arg12[%c2_94, %c0_95, %c0_96] : memref<3x8x128xf32, #tpu.memory_space<vmem>>, vector<1x8x128xf32>
    %165 = vector.shape_cast %164 : vector<1x8x128xf32> to vector<8x128xf32>
    %166 = vector.shape_cast %154 : vector<8x128xf32> to vector<1x8x128xf32>
    tpu.vector_store %arg12[%c2_94, %c0_95, %c0_96], %166 {strides = array<i32>} : memref<3x8x128xf32, #tpu.memory_space<vmem>>, vector<1x8x128xf32>,
    %c0_97 = arith.constant 0 : index
    %c0_98 = arith.constant 0 : index
    %c0_99 = arith.constant 0 : index
    %c0_100 = arith.constant 0 : index
    %167 = vector.load %arg15[%c0_97, %c0_98, %c0_99, %c0_100] : memref<3x1x8x128xf32, #tpu.memory_space<vmem>>, vector<1x1x8x128xf32>
    %168 = vector.shape_cast %167 : vector<1x1x8x128xf32> to vector<1x8x128xf32>
    %169 = vector.shape_cast %168 : vector<1x8x128xf32> to vector<8x128xf32>
    %170 = arith.truncf %169 : vector<8x128xf32> to vector<8x128xbf16>
    %c0_101 = arith.constant 0 : index
    %c0_102 = arith.constant 0 : index
    %c0_103 = arith.constant 0 : index
    %171 = vector.load %arg9[%c0_101, %c0_102, %c0_103] : memref<3x128x128xbf16, #tpu.memory_space<vmem>>, vector<1x128x128xbf16>
    %172 = vector.shape_cast %171 : vector<1x128x128xbf16> to vector<128x128xbf16>
    %cst_104 = arith.constant dense<0.000000e+00> : vector<8x128xf32>
    %173 = tpu.matmul %170, %172, %cst_104 {dimension_numbers = #tpu.dot_dimension_numbers<[1], [0], [0], [1], [0, 0, 1, 1], [], []>} : vector<8x128xbf16>, vector<128x128xbf16>, vector<8x128xf32> -> vector<8x128xf32>
    %c1_105 = arith.constant 1 : index
    %c0_106 = arith.constant 0 : index
    %c0_107 = arith.constant 0 : index
    %c0_108 = arith.constant 0 : index
    %174 = vector.load %arg15[%c1_105, %c0_106, %c0_107, %c0_108] : memref<3x1x8x128xf32, #tpu.memory_space<vmem>>, vector<1x1x8x128xf32>
    %175 = vector.shape_cast %174 : vector<1x1x8x128xf32> to vector<1x8x128xf32>
    %176 = vector.shape_cast %175 : vector<1x8x128xf32> to vector<8x128xf32>
    %177 = arith.truncf %176 : vector<8x128xf32> to vector<8x128xbf16>
    %c1_109 = arith.constant 1 : index
    %c0_110 = arith.constant 0 : index
    %c0_111 = arith.constant 0 : index
    %178 = vector.load %arg9[%c1_109, %c0_110, %c0_111] : memref<3x128x128xbf16, #tpu.memory_space<vmem>>, vector<1x128x128xbf16>
    %179 = vector.shape_cast %178 : vector<1x128x128xbf16> to vector<128x128xbf16>
    %cst_112 = arith.constant dense<0.000000e+00> : vector<8x128xf32>
    %180 = tpu.matmul %177, %179, %cst_112 {dimension_numbers = #tpu.dot_dimension_numbers<[1], [0], [0], [1], [0, 0, 1, 1], [], []>} : vector<8x128xbf16>, vector<128x128xbf16>, vector<8x128xf32> -> vector<8x128xf32>
    %181 = arith.addf %173, %180 : vector<8x128xf32>
    %c2_113 = arith.constant 2 : index
    %c0_114 = arith.constant 0 : index
    %c0_115 = arith.constant 0 : index
    %c0_116 = arith.constant 0 : index
    %182 = vector.load %arg15[%c2_113, %c0_114, %c0_115, %c0_116] : memref<3x1x8x128xf32, #tpu.memory_space<vmem>>, vector<1x1x8x128xf32>
    %183 = vector.shape_cast %182 : vector<1x1x8x128xf32> to vector<1x8x128xf32>
    %184 = vector.shape_cast %183 : vector<1x8x128xf32> to vector<8x128xf32>
    %185 = arith.truncf %184 : vector<8x128xf32> to vector<8x128xbf16>
    %c2_117 = arith.constant 2 : index
    %c0_118 = arith.constant 0 : index
    %c0_119 = arith.constant 0 : index
    %186 = vector.load %arg9[%c2_117, %c0_118, %c0_119] : memref<3x128x128xbf16, #tpu.memory_space<vmem>>, vector<1x128x128xbf16>
    %187 = vector.shape_cast %186 : vector<1x128x128xbf16> to vector<128x128xbf16>
    %cst_120 = arith.constant dense<0.000000e+00> : vector<8x128xf32>
    %188 = tpu.matmul %185, %187, %cst_120 {dimension_numbers = #tpu.dot_dimension_numbers<[1], [0], [0], [1], [0, 0, 1, 1], [], []>} : vector<8x128xbf16>, vector<128x128xbf16>, vector<8x128xf32> -> vector<8x128xf32>
    %189 = arith.addf %181, %188 : vector<8x128xf32>
    %190 = vector.shape_cast %189 : vector<8x128xf32> to vector<1x8x128xf32>
    %c0_121 = arith.constant 0 : index
    %c0_122 = arith.constant 0 : index
    %191 = vector.load %arg10[%c0_121, %c0_122] : memref<8x128xf32, #tpu.memory_space<vmem>>, vector<8x128xf32>
    %192 = vector.shape_cast %191 : vector<8x128xf32> to vector<1x8x128xf32>
    %193 = arith.addf %190, %192 : vector<1x8x128xf32>
    %c0_123 = arith.constant 0 : index
    %c0_124 = arith.constant 0 : index
    %c0_125 = arith.constant 0 : index
    %194 = vector.load %arg11[%c0_123, %c0_124, %c0_125] : memref<1x8x128xf32, #tpu.memory_space<vmem>>, vector<1x8x128xf32>
    tpu.vector_store %arg11[%c0_123, %c0_124, %c0_125], %193 {strides = array<i32>} : memref<1x8x128xf32, #tpu.memory_space<vmem>>, vector<1x8x128xf32>,
    return
  }
  func.func @transform_0(%arg0: i32) -> (i32, i32, i32) {
    %c0_i32 = arith.constant 0 : i32
    %c0_i32_0 = arith.constant 0 : i32
    %c0_i32_1 = arith.constant 0 : i32
    return %arg0, %c0_i32, %c0_i32_0 : i32, i32, i32
  }
  func.func @transform_1(%arg0: i32) -> (i32, i32) {
    %c0_i32 = arith.constant 0 : i32
    %c0_i32_0 = arith.constant 0 : i32
    %c0_i32_1 = arith.constant 0 : i32
    return %c0_i32, %c0_i32_0 : i32, i32
  }
  func.func @transform_2(%arg0: i32) -> (i32, i32) {
    %c0_i32 = arith.constant 0 : i32
    %c0_i32_0 = arith.constant 0 : i32
    %c0_i32_1 = arith.constant 0 : i32
    return %c0_i32, %c0_i32_0 : i32, i32
  }
  func.func @transform_3(%arg0: i32) -> (i32, i32, i32) {
    %c0_i32 = arith.constant 0 : i32
    %c0_i32_0 = arith.constant 0 : i32
    %c0_i32_1 = arith.constant 0 : i32
    %c0_i32_2 = arith.constant 0 : i32
    return %c0_i32, %c0_i32_0, %c0_i32_1 : i32, i32, i32
  }
  func.func @transform_4(%arg0: i32) -> (i32, i32, i32) {
    %c0_i32 = arith.constant 0 : i32
    %c0_i32_0 = arith.constant 0 : i32
    %c0_i32_1 = arith.constant 0 : i32
    %c0_i32_2 = arith.constant 0 : i32
    return %c0_i32, %c0_i32_0, %c0_i32_1 : i32, i32, i32
  }
  func.func @transform_5(%arg0: i32) -> (i32, i32, i32) {
    %c0_i32 = arith.constant 0 : i32
    %c0_i32_0 = arith.constant 0 : i32
    %c0_i32_1 = arith.constant 0 : i32
    %c0_i32_2 = arith.constant 0 : i32
    return %c0_i32, %c0_i32_0, %c0_i32_1 : i32, i32, i32
  }
  func.func @transform_6(%arg0: i32) -> (i32, i32, i32) {
    %c0_i32 = arith.constant 0 : i32
    %c0_i32_0 = arith.constant 0 : i32
    %c0_i32_1 = arith.constant 0 : i32
    %c0_i32_2 = arith.constant 0 : i32
    return %c0_i32, %c0_i32_0, %c0_i32_1 : i32, i32, i32
  }
  func.func @transform_7(%arg0: i32) -> (i32, i32, i32) {
    %c0_i32 = arith.constant 0 : i32
    %c0_i32_0 = arith.constant 0 : i32
    %c0_i32_1 = arith.constant 0 : i32
    %c0_i32_2 = arith.constant 0 : i32
    return %c0_i32, %c0_i32_0, %c0_i32_1 : i32, i32, i32
  }
  func.func @transform_8(%arg0: i32) -> (i32, i32, i32) {
    %c0_i32 = arith.constant 0 : i32
    %c0_i32_0 = arith.constant 0 : i32
    %c0_i32_1 = arith.constant 0 : i32
    %c0_i32_2 = arith.constant 0 : i32
    return %c0_i32, %c0_i32_0, %c0_i32_1 : i32, i32, i32
  }
  func.func @transform_9(%arg0: i32) -> (i32, i32) {
    %c0_i32 = arith.constant 0 : i32
    %c0_i32_0 = arith.constant 0 : i32
    %c0_i32_1 = arith.constant 0 : i32
    return %c0_i32, %c0_i32_0 : i32, i32
  }
  func.func @transform_10(%arg0: i32) -> (i32, i32, i32) {
    %c0_i32 = arith.constant 0 : i32
    %c0_i32_0 = arith.constant 0 : i32
    %c0_i32_1 = arith.constant 0 : i32
    return %arg0, %c0_i32, %c0_i32_0 : i32, i32, i32
  }
  func.func @transform_11(%arg0: i32) -> (i32, i32, i32) {
    %c0_i32 = arith.constant 0 : i32
    %c0_i32_0 = arith.constant 0 : i32
    %c0_i32_1 = arith.constant 0 : i32
    %c0_i32_2 = arith.constant 0 : i32
    return %c0_i32, %c0_i32_0, %c0_i32_1 : i32, i32, i32
  }
}

</mosaic_0001>

<llo_original>
// kernel: tpu_custom_call.1
$region0: #{tpu_custom_call.1}
  #allocation0 [shape = 'u32[]', space=smem, size = 0x4, offset = 0x4, fixed_abs, tag = 'smem constant byte address 0x4 - core index']
  #allocation1 [shape = 'u32[72,128]{1,0:T(1,128)}', space=vmem, size = 0x9000, scoped, tag = 'internal scratch']
  #allocation2 [shape = 'f32[1,8,128]{2,1,0:T(8,128)}', space=vmem, size = 0x1000, scoped, tag = 'scratch operand']
  #allocation3 [shape = 'f32[1,8,384]{2,1,0:T(8,128)}', space=vmem, size = 0x3000, scoped, tag = 'scratch operand']
  #allocation4 [shape = 'f32[3,1,8,128]{3,2,1,0:T(8,128)}', space=vmem, size = 0x3000, scoped, tag = 'scratch operand']
  %s0 = inlined_call_operand.vmem [shape: bf16[1,8,128], index: 0, kind: input, shape index: {}]
  %s1 = inlined_call_operand.hbm [shape: bf16[128,128], index: 1, kind: input, shape index: {}]
  %s2 = inlined_call_operand.vmem [shape: f32[8,128], index: 2, kind: input, shape index: {}]
  %s3 = inlined_call_operand.hbm [shape: bf16[3,128,384], index: 3, kind: input, shape index: {}]
  %s4 = inlined_call_operand.hbm [shape: f32[3,8,384], index: 4, kind: input, shape index: {}]
  %s5 = inlined_call_operand.hbm [shape: bf16[3,128,384], index: 5, kind: input, shape index: {}]
  %s6 = inlined_call_operand.hbm [shape: f32[3,8,384], index: 6, kind: input, shape index: {}]
  %s7 = inlined_call_operand.hbm [shape: f32[3,8,128], index: 7, kind: input, shape index: {}, may-alias: {7,11}]
  %s8 = inlined_call_operand.hbm [shape: bf16[3,128,128], index: 8, kind: input, shape index: {}]
  %s9 = inlined_call_operand.vmem [shape: f32[8,128], index: 9, kind: input, shape index: {}]
  %s10 = inlined_call_operand.hbm [shape: f32[1,8,128], index: 10, kind: output, shape index: {0}]
  %s11 = inlined_call_operand.hbm [shape: f32[3,8,128], index: 11, kind: output, shape index: {1}, may-alias: {7,11}]
  %12 = xla_tuple %s10, %s11
  %s13 = sld [smem:[#allocation0]]
  $region90: #{tpu_custom_call.1} parent=0
    _
  %s15 = ssub.s32 1, %s13
  %s16 = scalar_select 0, %s15, %s13
  $region1: #{tpu_custom_call.1} parent=0
    #allocation5 [shape = 'u8[32768]{0}', space=vmem, size = 0x8000, scoped, tag = 'input window, operand 1, single buffered']
    #allocation6 [shape = 's32[1]{0}', space=sflag, size = 0x4, scoped, tag = 'scoped memory for tpu_custom_call.1']
    #allocation7 [shape = 's32[1]{0}', space=sflag, size = 0x4, scoped, tag = 'scoped memory for tpu_custom_call.1']
    #allocation8 [shape = 'u8[294912]{0}', space=vmem, size = 0x48000, scoped, tag = 'input window, operand 3, single buffered']
    #allocation9 [shape = 's32[1]{0}', space=sflag, size = 0x4, scoped, tag = 'scoped memory for tpu_custom_call.1']
    #allocation10 [shape = 'u8[36864]{0}', space=vmem, size = 0x9000, scoped, tag = 'input window, operand 4, single buffered']
    #allocation11 [shape = 'u8[294912]{0}', space=vmem, size = 0x48000, scoped, tag = 'input window, operand 5, single buffered']
    #allocation12 [shape = 's32[1]{0}', space=sflag, size = 0x4, scoped, tag = 'scoped memory for tpu_custom_call.1']
    #allocation13 [shape = 'u8[36864]{0}', space=vmem, size = 0x9000, scoped, tag = 'input window, operand 6, single buffered']
    #allocation14 [shape = 'u8[12288]{0}', space=vmem, size = 0x3000, scoped, tag = 'input window, operand 7, single buffered']
    #allocation15 [shape = 's32[1]{0}', space=sflag, size = 0x4, scoped, tag = 'scoped memory for tpu_custom_call.1']
    #allocation16 [shape = 'u8[98304]{0}', space=vmem, size = 0x18000, scoped, tag = 'input window, operand 8, single buffered']
    #allocation17 [shape = 'u8[4096]{0}', space=vmem, size = 0x1000, scoped, tag = 'output window, operand 0, single buffered']
    #allocation18 [shape = 'u8[12288]{0}', space=vmem, size = 0x3000, scoped, tag = 'output window, operand 1, single buffered']
    #allocation19 [shape = 's32[1]{0}', space=sflag, size = 0x4, scoped, tag = 'scoped memory for tpu_custom_call.1']
    %17 = vsyncpa [#allocation6], 0
    %18 = vsyncpa [#allocation9], 0
    %19 = vsyncpa [#allocation12], 0
    %20 = vsyncpa [#allocation15], 0
    %21 = vsyncpa [#allocation7], 0
    %22 = vsyncpa [#allocation19], 0
    // Predicated region
    $region2: #{tpu_custom_call.1} parent=1 // pred_check
      _
    $region3: #{tpu_custom_call.1} parent=1 // pred_check_branch
      %24 = sbr.rel (0) target = $region5
    $region4: #{tpu_custom_call.1} parent=1 // pred_region
      _
    $region5: #{tpu_custom_call.1} parent=1 // pred_fallthru
      _
    // Predicated region
    $region6: #{tpu_custom_call.1} parent=1 // pred_check
      _
    $region7: #{tpu_custom_call.1} parent=1 // pred_check_branch
      %26 = sbr.rel (0) target = $region9
    $region8: #{tpu_custom_call.1} parent=1 // pred_region
      %28 = vsyncadd [#allocation6], 0
      %s29 = sshll.u32 %s1, 4
      %s30 = int_to_ptr.hbm [resolvable:$true] %s29
      %s31 = sshll.u32 [#allocation5], 4
      %s32 = int_to_ptr.vmem [resolvable:$true] %s31
      %37 = dma.hbm_to_vmem [thread:$0]  %s30, 1024, %s32, [#allocation6], 64, 64, 4
    $region9: #{tpu_custom_call.1} parent=1 // pred_fallthru
      _
    // Predicated region
    $region10: #{tpu_custom_call.1} parent=1 // pred_check
      _
    $region11: #{tpu_custom_call.1} parent=1 // pred_check_branch
      %39 = sbr.rel (0) target = $region13
    $region12: #{tpu_custom_call.1} parent=1 // pred_region
      _
    $region13: #{tpu_custom_call.1} parent=1 // pred_fallthru
      _
    // Predicated region
    $region14: #{tpu_custom_call.1} parent=1 // pred_check
      _
    $region15: #{tpu_custom_call.1} parent=1 // pred_check_branch
      %41 = sbr.rel (0) target = $region17
    $region16: #{tpu_custom_call.1} parent=1 // pred_region
      %43 = vsyncadd [#allocation9], 0
      %s44 = sshll.u32 %s3, 4
      %s45 = int_to_ptr.hbm [resolvable:$true] %s44
      %s46 = sshll.u32 [#allocation8], 4
      %s47 = int_to_ptr.vmem [resolvable:$true] %s46
      %52 = dma.hbm_to_vmem [thread:$0]  %s45, 9216, %s47, [#allocation9], 192, 192, 12
    $region17: #{tpu_custom_call.1} parent=1 // pred_fallthru
      _
    // Predicated region
    $region18: #{tpu_custom_call.1} parent=1 // pred_check
      _
    $region19: #{tpu_custom_call.1} parent=1 // pred_check_branch
      %54 = sbr.rel (0) target = $region21
    $region20: #{tpu_custom_call.1} parent=1 // pred_region
      %56 = vsyncadd [#allocation9], 0
      %s57 = sshll.u32 %s4, 4
      %s58 = int_to_ptr.hbm [resolvable:$true] %s57
      %s59 = sshll.u32 [#allocation10], 4
      %s60 = int_to_ptr.vmem [resolvable:$true] %s59
      %65 = dma.hbm_to_vmem [thread:$0]  %s58, 1152, %s60, [#allocation9], 384, 384, 24
    $region21: #{tpu_custom_call.1} parent=1 // pred_fallthru
      _
    // Predicated region
    $region22: #{tpu_custom_call.1} parent=1 // pred_check
      _
    $region23: #{tpu_custom_call.1} parent=1 // pred_check_branch
      %67 = sbr.rel (0) target = $region25
    $region24: #{tpu_custom_call.1} parent=1 // pred_region
      %69 = vsyncadd [#allocation12], 0
      %s70 = sshll.u32 %s5, 4
      %s71 = int_to_ptr.hbm [resolvable:$true] %s70
      %s72 = sshll.u32 [#allocation11], 4
      %s73 = int_to_ptr.vmem [resolvable:$true] %s72
      %78 = dma.hbm_to_vmem [thread:$0]  %s71, 9216, %s73, [#allocation12], 192, 192, 12
    $region25: #{tpu_custom_call.1} parent=1 // pred_fallthru
      _
    // Predicated region
    $region26: #{tpu_custom_call.1} parent=1 // pred_check
      _
    $region27: #{tpu_custom_call.1} parent=1 // pred_check_branch
      %80 = sbr.rel (0) target = $region29
    $region28: #{tpu_custom_call.1} parent=1 // pred_region
      %82 = vsyncadd [#allocation12], 0
      %s83 = sshll.u32 %s6, 4
      %s84 = int_to_ptr.hbm [resolvable:$true] %s83
      %s85 = sshll.u32 [#allocation13], 4
      %s86 = int_to_ptr.vmem [resolvable:$true] %s85
      %91 = dma.hbm_to_vmem [thread:$0]  %s84, 1152, %s86, [#allocation12], 384, 384, 24
    $region29: #{tpu_custom_call.1} parent=1 // pred_fallthru
      _
    // Predicated region
    $region30: #{tpu_custom_call.1} parent=1 // pred_check
      _
    $region31: #{tpu_custom_call.1} parent=1 // pred_check_branch
      %93 = sbr.rel (0) target = $region33
    $region32: #{tpu_custom_call.1} parent=1 // pred_region
      %95 = vsyncadd [#allocation15], 0
      %s96 = sshll.u32 %s7, 4
      %s97 = int_to_ptr.hbm [resolvable:$true] %s96
      %s98 = sshll.u32 [#allocation14], 4
      %s99 = int_to_ptr.vmem [resolvable:$true] %s98
      %104 = dma.hbm_to_vmem [thread:$0]  %s97, 384, %s99, [#allocation15], 128, 128, 8
    $region33: #{tpu_custom_call.1} parent=1 // pred_fallthru
      _
    // Predicated region
    $region34: #{tpu_custom_call.1} parent=1 // pred_check
      _
    $region35: #{tpu_custom_call.1} parent=1 // pred_check_branch
      %106 = sbr.rel (0) target = $region37
    $region36: #{tpu_custom_call.1} parent=1 // pred_region
      %108 = vsyncadd [#allocation15], 0
      %s109 = sshll.u32 %s8, 4
      %s110 = int_to_ptr.hbm [resolvable:$true] %s109
      %s111 = sshll.u32 [#allocation16], 4
      %s112 = int_to_ptr.vmem [resolvable:$true] %s111
      %117 = dma.hbm_to_vmem [thread:$0]  %s110, 3072, %s112, [#allocation15], 64, 64, 4
    $region37: #{tpu_custom_call.1} parent=1 // pred_fallthru
      _
    // Predicated region
    $region38: #{tpu_custom_call.1} parent=1 // pred_check
      _
    $region39: #{tpu_custom_call.1} parent=1 // pred_check_branch
      %119 = sbr.rel (0) target = $region41
    $region40: #{tpu_custom_call.1} parent=1 // pred_region
      _
    $region41: #{tpu_custom_call.1} parent=1 // pred_fallthru
      _
    // Predicated region
    $region42: #{tpu_custom_call.1} parent=1 // pred_check
      _
    $region43: #{tpu_custom_call.1} parent=1 // pred_check_branch
      %121 = sbr.rel (0) target = $region45
    $region44: #{tpu_custom_call.1} parent=1 // pred_region
      %123 = dma.done [#allocation6], 1024
    $region45: #{tpu_custom_call.1} parent=1 // pred_fallthru
      _
    // Predicated region
    $region46: #{tpu_custom_call.1} parent=1 // pred_check
      _
    $region47: #{tpu_custom_call.1} parent=1 // pred_check_branch
      %125 = sbr.rel (0) target = $region49
    $region48: #{tpu_custom_call.1} parent=1 // pred_region
      %127 = dma.done [#allocation9], 9216
    $region49: #{tpu_custom_call.1} parent=1 // pred_fallthru
      _
    // Predicated region
    $region50: #{tpu_custom_call.1} parent=1 // pred_check
      _
    $region51: #{tpu_custom_call.1} parent=1 // pred_check_branch
      %129 = sbr.rel (0) target = $region53
    $region52: #{tpu_custom_call.1} parent=1 // pred_region
      %131 = dma.done [#allocation9], 1152
    $region53: #{tpu_custom_call.1} parent=1 // pred_fallthru
      _
    // Predicated region
    $region54: #{tpu_custom_call.1} parent=1 // pred_check
      _
    $region55: #{tpu_custom_call.1} parent=1 // pred_check_branch
      %133 = sbr.rel (0) target = $region57
    $region56: #{tpu_custom_call.1} parent=1 // pred_region
      %135 = dma.done [#allocation12], 9216
    $region57: #{tpu_custom_call.1} parent=1 // pred_fallthru
      _
    // Predicated region
    $region58: #{tpu_custom_call.1} parent=1 // pred_check
      _
    $region59: #{tpu_custom_call.1} parent=1 // pred_check_branch
      %137 = sbr.rel (0) target = $region61
    $region60: #{tpu_custom_call.1} parent=1 // pred_region
      %139 = dma.done [#allocation12], 1152
    $region61: #{tpu_custom_call.1} parent=1 // pred_fallthru
      _
    // Predicated region
    $region62: #{tpu_custom_call.1} parent=1 // pred_check
      _
    $region63: #{tpu_custom_call.1} parent=1 // pred_check_branch
      %141 = sbr.rel (0) target = $region65
    $region64: #{tpu_custom_call.1} parent=1 // pred_region
      %143 = dma.done [#allocation15], 384
    $region65: #{tpu_custom_call.1} parent=1 // pred_fallthru
      _
    // Predicated region
    $region66: #{tpu_custom_call.1} parent=1 // pred_check
      _
    $region67: #{tpu_custom_call.1} parent=1 // pred_check_branch
      %145 = sbr.rel (0) target = $region69
    $region68: #{tpu_custom_call.1} parent=1 // pred_region
      %147 = dma.done [#allocation15], 3072
    $region69: #{tpu_custom_call.1} parent=1 // pred_fallthru
      _
    %p148 = scmp.eq.s32.totalorder 0, 0
    // Predicated region
    $region70: #{tpu_custom_call.1} parent=1 // pred_check
      %p149 = pneg %p148
    $region71: #{tpu_custom_call.1} parent=1 // pred_check_branch
      %151 = sbr.rel (%p149) target = $region73
    $region72: #{tpu_custom_call.1} parent=1 // pred_region
      %v152 = vld [vmem:[#allocation14] sm:$0xff]
      %v153 = vld [vmem:[#allocation14 + $0x8] sm:$0xff]
      %v154 = vld [vmem:[#allocation14 + $0x10] sm:$0xff]
      %155 = vst [vmem:[#allocation18] sm:$0xff] %v152
      %156 = vst [vmem:[#allocation18 + $0x8] sm:$0xff] %v153
      %157 = vst [vmem:[#allocation18 + $0x10] sm:$0xff] %v154
    $region73: #{tpu_custom_call.1} parent=1 // pred_fallthru
      _
    %v158 = vld [vmem:[%s0] sm:$0xf]
    %v159 = vld [vmem:[#allocation5] sm:$0xf]
    %v160 = vld [vmem:[#allocation5 + $0x4] sm:$0xf]
    %v161 = vld [vmem:[#allocation5 + $0x8] sm:$0xf]
    %v162 = vld [vmem:[#allocation5 + $0xc] sm:$0xf]
    %v163 = vld [vmem:[#allocation5 + $0x10] sm:$0xf]
    %v164 = vld [vmem:[#allocation5 + $0x14] sm:$0xf]
    %v165 = vld [vmem:[#allocation5 + $0x18] sm:$0xf]
    %v166 = vld [vmem:[#allocation5 + $0x1c] sm:$0xf]
    %v167 = vld [vmem:[#allocation5 + $0x20] sm:$0xf]
    %v168 = vld [vmem:[#allocation5 + $0x24] sm:$0xf]
    %v169 = vld [vmem:[#allocation5 + $0x28] sm:$0xf]
    %v170 = vld [vmem:[#allocation5 + $0x2c] sm:$0xf]
    %v171 = vld [vmem:[#allocation5 + $0x30] sm:$0xf]
    %v172 = vld [vmem:[#allocation5 + $0x34] sm:$0xf]
    %v173 = vld [vmem:[#allocation5 + $0x38] sm:$0xf]
    %v174 = vld [vmem:[#allocation5 + $0x3c] sm:$0xf]
    %v191 = vunpack.c.l.b16 %v159
    %v192 = vunpack.c.l.b16 %v160
    %v193 = vunpack.c.l.b16 %v161
    %v194 = vunpack.c.l.b16 %v162
    %v195 = vunpack.c.l.b16 %v163
    %v196 = vunpack.c.l.b16 %v164
    %v197 = vunpack.c.l.b16 %v165
    %v198 = vunpack.c.l.b16 %v166
    %v199 = vunpack.c.l.b16 %v167
    %v200 = vunpack.c.l.b16 %v168
    %v201 = vunpack.c.l.b16 %v169
    %v202 = vunpack.c.l.b16 %v170
    %v203 = vunpack.c.l.b16 %v171
    %v204 = vunpack.c.l.b16 %v172
    %v205 = vunpack.c.l.b16 %v173
    %v206 = vunpack.c.l.b16 %v174
    %v207 = vpack.c.b16 %v192, %v191
    %v208 = vpack.c.b16 %v194, %v193
    %v209 = vpack.c.b16 %v196, %v195
    %v210 = vpack.c.b16 %v198, %v197
    %v211 = vpack.c.b16 %v200, %v199
    %v212 = vpack.c.b16 %v202, %v201
    %v213 = vpack.c.b16 %v204, %v203
    %v214 = vpack.c.b16 %v206, %v205
    %223 = vmatpush.bf16.msra.mxu0 %v214
    %224 = vmatpush.bf16.msra.mxu0 %v213
    %225 = vmatpush.bf16.msra.mxu0 %v212
    %226 = vmatpush.bf16.msra.mxu0 %v211
    %227 = vmatpush.bf16.msra.mxu0 %v210
    %228 = vmatpush.bf16.msra.mxu0 %v209
    %229 = vmatpush.bf16.msra.mxu0 %v208
    %230 = vmatpush.bf16.msra.mxu0 %v207
    %231 = vmatmul.bf16.gmra.mxu0 %v158
    %v232 = vpop.f32.mrf.mxu0
    %v233 = vadd.f32 0.0, %v232
    %v234 = vpop.f32.mrf.mxu0
    %235 = vdwg.mxu0
    %v236 = vld [vmem:[%s2] sm:$0xff]
    %v237 = vadd.f32 %v233, %v236
    %vm238 = vcmp.gt.f32.partialorder %v237, 0.0
    %v239 = vmul.f32 %v237, 0.1
    %v240 = vsel %vm238, %v237, %v239
    %241 = vst [vmem:[#allocation2] sm:$0xff] %v240
    %v242 = vpack.c.bf16 %v240, %v240
    %v243 = vld [vmem:[#allocation8] sm:$0xff]
    %v244 = vld [vmem:[#allocation8 + $0x8] sm:$0xf]
    %v245 = vld [vmem:[#allocation8 + $0xc] sm:$0xff]
    %v246 = vld [vmem:[#allocation8 + $0x14] sm:$0xf]
    %v247 = vld [vmem:[#allocation8 + $0x18] sm:$0xff]
    %v248 = vld [vmem:[#allocation8 + $0x20] sm:$0xf]
    %v249 = vld [vmem:[#allocation8 + $0x24] sm:$0xff]
    %v250 = vld [vmem:[#allocation8 + $0x2c] sm:$0xf]
    %v251 = vld [vmem:[#allocation8 + $0x30] sm:$0xff]
    %v252 = vld [vmem:[#allocation8 + $0x38] sm:$0xf]
    %v253 = vld [vmem:[#allocation8 + $0x3c] sm:$0xff]
    %v254 = vld [vmem:[#allocation8 + $0x44] sm:$0xf]
    %v255 = vld [vmem:[#allocation8 + $0x48] sm:$0xff]
    %v256 = vld [vmem:[#allocation8 + $0x50] sm:$0xf]
    %v257 = vld [vmem:[#allocation8 + $0x54] sm:$0xff]
    %v258 = vld [vmem:[#allocation8 + $0x5c] sm:$0xf]
    %v259 = vld [vmem:[#allocation8 + $0x60] sm:$0xff]
    %v260 = vld [vmem:[#allocation8 + $0x68] sm:$0xf]
    %v261 = vld [vmem:[#allocation8 + $0x6c] sm:$0xff]
    %v262 = vld [vmem:[#allocation8 + $0x74] sm:$0xf]
    %v263 = vld [vmem:[#allocation8 + $0x78] sm:$0xff]
    %v264 = vld [vmem:[#allocation8 + $0x80] sm:$0xf]
    %v265 = vld [vmem:[#allocation8 + $0x84] sm:$0xff]
    %v266 = vld [vmem:[#allocation8 + $0x8c] sm:$0xf]
    %v267 = vld [vmem:[#allocation8 + $0x90] sm:$0xff]
    %v268 = vld [vmem:[#allocation8 + $0x98] sm:$0xf]
    %v269 = vld [vmem:[#allocation8 + $0x9c] sm:$0xff]
    %v270 = vld [vmem:[#allocation8 + $0xa4] sm:$0xf]
    %v271 = vld [vmem:[#allocation8 + $0xa8] sm:$0xff]
    %v272 = vld [vmem:[#allocation8 + $0xb0] sm:$0xf]
    %v273 = vld [vmem:[#allocation8 + $0xb4] sm:$0xff]
    %v274 = vld [vmem:[#allocation8 + $0xbc] sm:$0xf]
    %v307 = vunpack.c.l.b16 %v243
    %v308 = vunpack.c.h.b16 %v243
    %v309 = vunpack.c.l.b16 %v244
    %v310 = vunpack.c.l.b16 %v245
    %v311 = vunpack.c.h.b16 %v245
    %v312 = vunpack.c.l.b16 %v246
    %v313 = vunpack.c.l.b16 %v247
    %v314 = vunpack.c.h.b16 %v247
    %v315 = vunpack.c.l.b16 %v248
    %v316 = vunpack.c.l.b16 %v249
    %v317 = vunpack.c.h.b16 %v249
    %v318 = vunpack.c.l.b16 %v250
    %v319 = vunpack.c.l.b16 %v251
    %v320 = vunpack.c.h.b16 %v251
    %v321 = vunpack.c.l.b16 %v252
    %v322 = vunpack.c.l.b16 %v253
    %v323 = vunpack.c.h.b16 %v253
    %v324 = vunpack.c.l.b16 %v254
    %v325 = vunpack.c.l.b16 %v255
    %v326 = vunpack.c.h.b16 %v255
    %v327 = vunpack.c.l.b16 %v256
    %v328 = vunpack.c.l.b16 %v257
    %v329 = vunpack.c.h.b16 %v257
    %v330 = vunpack.c.l.b16 %v258
    %v331 = vunpack.c.l.b16 %v259
    %v332 = vunpack.c.h.b16 %v259
    %v333 = vunpack.c.l.b16 %v260
    %v334 = vunpack.c.l.b16 %v261
    %v335 = vunpack.c.h.b16 %v261
    %v336 = vunpack.c.l.b16 %v262
    %v337 = vunpack.c.l.b16 %v263
    %v338 = vunpack.c.h.b16 %v263
    %v339 = vunpack.c.l.b16 %v264
    %v340 = vunpack.c.l.b16 %v265
    %v341 = vunpack.c.h.b16 %v265
    %v342 = vunpack.c.l.b16 %v266
    %v343 = vunpack.c.l.b16 %v267
    %v344 = vunpack.c.h.b16 %v267
    %v345 = vunpack.c.l.b16 %v268
    %v346 = vunpack.c.l.b16 %v269
    %v347 = vunpack.c.h.b16 %v269
    %v348 = vunpack.c.l.b16 %v270
    %v349 = vunpack.c.l.b16 %v271
    %v350 = vunpack.c.h.b16 %v271
    %v351 = vunpack.c.l.b16 %v272
    %v352 = vunpack.c.l.b16 %v273
    %v353 = vunpack.c.h.b16 %v273
    %v354 = vunpack.c.l.b16 %v274
    %v355 = vpack.c.b16 %v310, %v307
    %v356 = vpack.c.b16 %v311, %v308
    %v357 = vpack.c.b16 %v312, %v309
    %v358 = vpack.c.b16 %v316, %v313
    %v359 = vpack.c.b16 %v317, %v314
    %v360 = vpack.c.b16 %v318, %v315
    %v361 = vpack.c.b16 %v322, %v319
    %v362 = vpack.c.b16 %v323, %v320
    %v363 = vpack.c.b16 %v324, %v321
    %v364 = vpack.c.b16 %v328, %v325
    %v365 = vpack.c.b16 %v329, %v326
    %v366 = vpack.c.b16 %v330, %v327
    %v367 = vpack.c.b16 %v334, %v331
    %v368 = vpack.c.b16 %v335, %v332
    %v369 = vpack.c.b16 %v336, %v333
    %v370 = vpack.c.b16 %v340, %v337
    %v371 = vpack.c.b16 %v341, %v338
    %v372 = vpack.c.b16 %v342, %v339
    %v373 = vpack.c.b16 %v346, %v343
    %v374 = vpack.c.b16 %v347, %v344
    %v375 = vpack.c.b16 %v348, %v345
    %v376 = vpack.c.b16 %v352, %v349
    %v377 = vpack.c.b16 %v353, %v350
    %v378 = vpack.c.b16 %v354, %v351
    %403 = vmatpush.bf16.msra.mxu0 %v376
    %404 = vmatpush.bf16.msra.mxu0 %v373
    %405 = vmatpush.bf16.msra.mxu0 %v370
    %406 = vmatpush.bf16.msra.mxu0 %v367
    %407 = vmatpush.bf16.msra.mxu0 %v364
    %408 = vmatpush.bf16.msra.mxu0 %v361
    %409 = vmatpush.bf16.msra.mxu0 %v358
    %410 = vmatpush.bf16.msra.mxu0 %v355
    %411 = vmatmul.bf16.gmra.mxu0 %v242
    %v412 = vpop.f32.mrf.mxu0
    %v413 = vadd.f32 0.0, %v412
    %v414 = vpop.f32.mrf.mxu0
    %415 = vdwg.mxu0
    %416 = vmatpush.bf16.msra.mxu0 %v377
    %417 = vmatpush.bf16.msra.mxu0 %v374
    %418 = vmatpush.bf16.msra.mxu0 %v371
    %419 = vmatpush.bf16.msra.mxu0 %v368
    %420 = vmatpush.bf16.msra.mxu0 %v365
    %421 = vmatpush.bf16.msra.mxu0 %v362
    %422 = vmatpush.bf16.msra.mxu0 %v359
    %423 = vmatpush.bf16.msra.mxu0 %v356
    %424 = vmatmul.bf16.gmra.mxu0 %v242
    %v425 = vpop.f32.mrf.mxu0
    %v426 = vadd.f32 0.0, %v425
    %v427 = vpop.f32.mrf.mxu0
    %428 = vdwg.mxu0
    %429 = vmatpush.bf16.msra.mxu0 %v378
    %430 = vmatpush.bf16.msra.mxu0 %v375
    %431 = vmatpush.bf16.msra.mxu0 %v372
    %432 = vmatpush.bf16.msra.mxu0 %v369
    %433 = vmatpush.bf16.msra.mxu0 %v366
    %434 = vmatpush.bf16.msra.mxu0 %v363
    %435 = vmatpush.bf16.msra.mxu0 %v360
    %436 = vmatpush.bf16.msra.mxu0 %v357
    %437 = vmatmul.bf16.gmra.mxu0 %v242
    %v438 = vpop.f32.mrf.mxu0
    %v439 = vadd.f32 0.0, %v438
    %v440 = vpop.f32.mrf.mxu0
    %441 = vdwg.mxu0
    %v442 = vld [vmem:[#allocation10] sm:$0xff]
    %v443 = vld [vmem:[#allocation10 + $0x8] sm:$0xff]
    %v444 = vld [vmem:[#allocation10 + $0x10] sm:$0xff]
    %v445 = vadd.f32 %v413, %v442
    %v446 = vadd.f32 %v426, %v443
    %v447 = vadd.f32 %v439, %v444
    %448 = vst [vmem:[#allocation3] sm:$0xff] %v445
    %449 = vst [vmem:[#allocation3 + $0x8] sm:$0xff] %v446
    %450 = vst [vmem:[#allocation3 + $0x10] sm:$0xff] %v447
    %v451 = vld [vmem:[#allocation18] sm:$0xff]
    %s452 = scalar_lea.vmem [#allocation18], 8
    %v453 = vld [vmem:[%s452] sm:$0xff]
    %s454 = scalar_lea.vmem [#allocation18], 16
    %v455 = vld [vmem:[%s454] sm:$0xff]
    %v456 = vpack.c.bf16 %v451, %v451
    %v457 = vld [vmem:[#allocation11] sm:$0xff]
    %v458 = vld [vmem:[#allocation11 + $0x8] sm:$0xf]
    %v459 = vld [vmem:[#allocation11 + $0xc] sm:$0xff]
    %v460 = vld [vmem:[#allocation11 + $0x14] sm:$0xf]
    %v461 = vld [vmem:[#allocation11 + $0x18] sm:$0xff]
    %v462 = vld [vmem:[#allocation11 + $0x20] sm:$0xf]
    %v463 = vld [vmem:[#allocation11 + $0x24] sm:$0xff]
    %v464 = vld [vmem:[#allocation11 + $0x2c] sm:$0xf]
    %v465 = vld [vmem:[#allocation11 + $0x30] sm:$0xff]
    %v466 = vld [vmem:[#allocation11 + $0x38] sm:$0xf]
    %v467 = vld [vmem:[#allocation11 + $0x3c] sm:$0xff]
    %v468 = vld [vmem:[#allocation11 + $0x44] sm:$0xf]
    %v469 = vld [vmem:[#allocation11 + $0x48] sm:$0xff]
    %v470 = vld [vmem:[#allocation11 + $0x50] sm:$0xf]
    %v471 = vld [vmem:[#allocation11 + $0x54] sm:$0xff]
    %v472 = vld [vmem:[#allocation11 + $0x5c] sm:$0xf]
    %v473 = vld [vmem:[#allocation11 + $0x60] sm:$0xff]
    %v474 = vld [vmem:[#allocation11 + $0x68] sm:$0xf]
    %v475 = vld [vmem:[#allocation11 + $0x6c] sm:$0xff]
    %v476 = vld [vmem:[#allocation11 + $0x74] sm:$0xf]
    %v477 = vld [vmem:[#allocation11 + $0x78] sm:$0xff]
    %v478 = vld [vmem:[#allocation11 + $0x80] sm:$0xf]
    %v479 = vld [vmem:[#allocation11 + $0x84] sm:$0xff]
    %v480 = vld [vmem:[#allocation11 + $0x8c] sm:$0xf]
    %v481 = vld [vmem:[#allocation11 + $0x90] sm:$0xff]
    %v482 = vld [vmem:[#allocation11 + $0x98] sm:$0xf]
    %v483 = vld [vmem:[#allocation11 + $0x9c] sm:$0xff]
    %v484 = vld [vmem:[#allocation11 + $0xa4] sm:$0xf]
    %v485 = vld [vmem:[#allocation11 + $0xa8] sm:$0xff]
    %v486 = vld [vmem:[#allocation11 + $0xb0] sm:$0xf]
    %v487 = vld [vmem:[#allocation11 + $0xb4] sm:$0xff]
    %v488 = vld [vmem:[#allocation11 + $0xbc] sm:$0xf]
    %v489 = vld [vmem:[#allocation13] sm:$0xff]
    %v490 = vld [vmem:[#allocation13 + $0x8] sm:$0xff]
    %v491 = vld [vmem:[#allocation13 + $0x10] sm:$0xff]
    %v524 = vunpack.c.l.b16 %v457
    %v525 = vunpack.c.h.b16 %v457
    %v526 = vunpack.c.l.b16 %v458
    %v527 = vunpack.c.l.b16 %v459
    %v528 = vunpack.c.h.b16 %v459
    %v529 = vunpack.c.l.b16 %v460
    %v530 = vunpack.c.l.b16 %v461
    %v531 = vunpack.c.h.b16 %v461
    %v532 = vunpack.c.l.b16 %v462
    %v533 = vunpack.c.l.b16 %v463
    %v534 = vunpack.c.h.b16 %v463
    %v535 = vunpack.c.l.b16 %v464
    %v536 = vunpack.c.l.b16 %v465
    %v537 = vunpack.c.h.b16 %v465
    %v538 = vunpack.c.l.b16 %v466
    %v539 = vunpack.c.l.b16 %v467
    %v540 = vunpack.c.h.b16 %v467
    %v541 = vunpack.c.l.b16 %v468
    %v542 = vunpack.c.l.b16 %v469
    %v543 = vunpack.c.h.b16 %v469
    %v544 = vunpack.c.l.b16 %v470
    %v545 = vunpack.c.l.b16 %v471
    %v546 = vunpack.c.h.b16 %v471
    %v547 = vunpack.c.l.b16 %v472
    %v548 = vunpack.c.l.b16 %v473
    %v549 = vunpack.c.h.b16 %v473
    %v550 = vunpack.c.l.b16 %v474
    %v551 = vunpack.c.l.b16 %v475
    %v552 = vunpack.c.h.b16 %v475
    %v553 = vunpack.c.l.b16 %v476
    %v554 = vunpack.c.l.b16 %v477
    %v555 = vunpack.c.h.b16 %v477
    %v556 = vunpack.c.l.b16 %v478
    %v557 = vunpack.c.l.b16 %v479
    %v558 = vunpack.c.h.b16 %v479
    %v559 = vunpack.c.l.b16 %v480
    %v560 = vunpack.c.l.b16 %v481
    %v561 = vunpack.c.h.b16 %v481
    %v562 = vunpack.c.l.b16 %v482
    %v563 = vunpack.c.l.b16 %v483
    %v564 = vunpack.c.h.b16 %v483
    %v565 = vunpack.c.l.b16 %v484
    %v566 = vunpack.c.l.b16 %v485
    %v567 = vunpack.c.h.b16 %v485
    %v568 = vunpack.c.l.b16 %v486
    %v569 = vunpack.c.l.b16 %v487
    %v570 = vunpack.c.h.b16 %v487
    %v571 = vunpack.c.l.b16 %v488
    %v572 = vpack.c.b16 %v527, %v524
    %v573 = vpack.c.b16 %v528, %v525
    %v574 = vpack.c.b16 %v529, %v526
    %v575 = vpack.c.b16 %v533, %v530
    %v576 = vpack.c.b16 %v534, %v531
    %v577 = vpack.c.b16 %v535, %v532
    %v578 = vpack.c.b16 %v539, %v536
    %v579 = vpack.c.b16 %v540, %v537
    %v580 = vpack.c.b16 %v541, %v538
    %v581 = vpack.c.b16 %v545, %v542
    %v582 = vpack.c.b16 %v546, %v543
    %v583 = vpack.c.b16 %v547, %v544
    %v584 = vpack.c.b16 %v551, %v548
    %v585 = vpack.c.b16 %v552, %v549
    %v586 = vpack.c.b16 %v553, %v550
    %v587 = vpack.c.b16 %v557, %v554
    %v588 = vpack.c.b16 %v558, %v555
    %v589 = vpack.c.b16 %v559, %v556
    %v590 = vpack.c.b16 %v563, %v560
    %v591 = vpack.c.b16 %v564, %v561
    %v592 = vpack.c.b16 %v565, %v562
    %v593 = vpack.c.b16 %v569, %v566
    %v594 = vpack.c.b16 %v570, %v567
    %v595 = vpack.c.b16 %v571, %v568
    %620 = vmatpush.bf16.msra.mxu0 %v593
    %621 = vmatpush.bf16.msra.mxu0 %v590
    %622 = vmatpush.bf16.msra.mxu0 %v587
    %623 = vmatpush.bf16.msra.mxu0 %v584
    %624 = vmatpush.bf16.msra.mxu0 %v581
    %625 = vmatpush.bf16.msra.mxu0 %v578
    %626 = vmatpush.bf16.msra.mxu0 %v575
    %627 = vmatpush.bf16.msra.mxu0 %v572
    %628 = vmatmul.bf16.gmra.mxu0 %v456
    %v629 = vpop.f32.mrf.mxu0
    %v630 = vadd.f32 %v489, %v629
    %v631 = vpop.f32.mrf.mxu0
    %632 = vdwg.mxu0
    %633 = vmatpush.bf16.msra.mxu0 %v594
    %634 = vmatpush.bf16.msra.mxu0 %v591
    %635 = vmatpush.bf16.msra.mxu0 %v588
    %636 = vmatpush.bf16.msra.mxu0 %v585
    %637 = vmatpush.bf16.msra.mxu0 %v582
    %638 = vmatpush.bf16.msra.mxu0 %v579
    %639 = vmatpush.bf16.msra.mxu0 %v576
    %640 = vmatpush.bf16.msra.mxu0 %v573
    %641 = vmatmul.bf16.gmra.mxu0 %v456
    %v642 = vpop.f32.mrf.mxu0
    %v643 = vadd.f32 %v490, %v642
    %v644 = vpop.f32.mrf.mxu0
    %645 = vdwg.mxu0
    %646 = vmatpush.bf16.msra.mxu0 %v595
    %647 = vmatpush.bf16.msra.mxu0 %v592
    %648 = vmatpush.bf16.msra.mxu0 %v589
    %649 = vmatpush.bf16.msra.mxu0 %v586
    %650 = vmatpush.bf16.msra.mxu0 %v583
    %651 = vmatpush.bf16.msra.mxu0 %v580
    %652 = vmatpush.bf16.msra.mxu0 %v577
    %653 = vmatpush.bf16.msra.mxu0 %v574
    %654 = vmatmul.bf16.gmra.mxu0 %v456
    %v655 = vpop.f32.mrf.mxu0
    %v656 = vadd.f32 %v491, %v655
    %v657 = vpop.f32.mrf.mxu0
    %658 = vdwg.mxu0
    %v659 = vpack.c.bf16 %v453, %v453
    %s660 = scalar_lea.vmem [#allocation11], 192
    %v661 = vld [vmem:[%s660] sm:$0xff]
    %v662 = vld [vmem:[%s660 + $0x8] sm:$0xf]
    %v663 = vld [vmem:[%s660 + $0xc] sm:$0xff]
    %v664 = vld [vmem:[%s660 + $0x14] sm:$0xf]
    %v665 = vld [vmem:[%s660 + $0x18] sm:$0xff]
    %v666 = vld [vmem:[%s660 + $0x20] sm:$0xf]
    %v667 = vld [vmem:[%s660 + $0x24] sm:$0xff]
    %v668 = vld [vmem:[%s660 + $0x2c] sm:$0xf]
    %v669 = vld [vmem:[%s660 + $0x30] sm:$0xff]
    %v670 = vld [vmem:[%s660 + $0x38] sm:$0xf]
    %v671 = vld [vmem:[%s660 + $0x3c] sm:$0xff]
    %v672 = vld [vmem:[%s660 + $0x44] sm:$0xf]
    %v673 = vld [vmem:[%s660 + $0x48] sm:$0xff]
    %v674 = vld [vmem:[%s660 + $0x50] sm:$0xf]
    %v675 = vld [vmem:[%s660 + $0x54] sm:$0xff]
    %v676 = vld [vmem:[%s660 + $0x5c] sm:$0xf]
    %v677 = vld [vmem:[%s660 + $0x60] sm:$0xff]
    %v678 = vld [vmem:[%s660 + $0x68] sm:$0xf]
    %v679 = vld [vmem:[%s660 + $0x6c] sm:$0xff]
    %v680 = vld [vmem:[%s660 + $0x74] sm:$0xf]
    %v681 = vld [vmem:[%s660 + $0x78] sm:$0xff]
    %v682 = vld [vmem:[%s660 + $0x80] sm:$0xf]
    %v683 = vld [vmem:[%s660 + $0x84] sm:$0xff]
    %v684 = vld [vmem:[%s660 + $0x8c] sm:$0xf]
    %v685 = vld [vmem:[%s660 + $0x90] sm:$0xff]
    %v686 = vld [vmem:[%s660 + $0x98] sm:$0xf]
    %v687 = vld [vmem:[%s660 + $0x9c] sm:$0xff]
    %v688 = vld [vmem:[%s660 + $0xa4] sm:$0xf]
    %v689 = vld [vmem:[%s660 + $0xa8] sm:$0xff]
    %v690 = vld [vmem:[%s660 + $0xb0] sm:$0xf]
    %v691 = vld [vmem:[%s660 + $0xb4] sm:$0xff]
    %v692 = vld [vmem:[%s660 + $0xbc] sm:$0xf]
    %s693 = scalar_lea.vmem [#allocation13], 24
    %v694 = vld [vmem:[%s693] sm:$0xff]
    %v695 = vld [vmem:[%s693 + $0x8] sm:$0xff]
    %v696 = vld [vmem:[%s693 + $0x10] sm:$0xff]
    %v729 = vunpack.c.l.b16 %v661
    %v730 = vunpack.c.h.b16 %v661
    %v731 = vunpack.c.l.b16 %v662
    %v732 = vunpack.c.l.b16 %v663
    %v733 = vunpack.c.h.b16 %v663
    %v734 = vunpack.c.l.b16 %v664
    %v735 = vunpack.c.l.b16 %v665
    %v736 = vunpack.c.h.b16 %v665
    %v737 = vunpack.c.l.b16 %v666
    %v738 = vunpack.c.l.b16 %v667
    %v739 = vunpack.c.h.b16 %v667
    %v740 = vunpack.c.l.b16 %v668
    %v741 = vunpack.c.l.b16 %v669
    %v742 = vunpack.c.h.b16 %v669
    %v743 = vunpack.c.l.b16 %v670
    %v744 = vunpack.c.l.b16 %v671
    %v745 = vunpack.c.h.b16 %v671
    %v746 = vunpack.c.l.b16 %v672
    %v747 = vunpack.c.l.b16 %v673
    %v748 = vunpack.c.h.b16 %v673
    %v749 = vunpack.c.l.b16 %v674
    %v750 = vunpack.c.l.b16 %v675
    %v751 = vunpack.c.h.b16 %v675
    %v752 = vunpack.c.l.b16 %v676
    %v753 = vunpack.c.l.b16 %v677
    %v754 = vunpack.c.h.b16 %v677
    %v755 = vunpack.c.l.b16 %v678
    %v756 = vunpack.c.l.b16 %v679
    %v757 = vunpack.c.h.b16 %v679
    %v758 = vunpack.c.l.b16 %v680
    %v759 = vunpack.c.l.b16 %v681
    %v760 = vunpack.c.h.b16 %v681
    %v761 = vunpack.c.l.b16 %v682
    %v762 = vunpack.c.l.b16 %v683
    %v763 = vunpack.c.h.b16 %v683
    %v764 = vunpack.c.l.b16 %v684
    %v765 = vunpack.c.l.b16 %v685
    %v766 = vunpack.c.h.b16 %v685
    %v767 = vunpack.c.l.b16 %v686
    %v768 = vunpack.c.l.b16 %v687
    %v769 = vunpack.c.h.b16 %v687
    %v770 = vunpack.c.l.b16 %v688
    %v771 = vunpack.c.l.b16 %v689
    %v772 = vunpack.c.h.b16 %v689
    %v773 = vunpack.c.l.b16 %v690
    %v774 = vunpack.c.l.b16 %v691
    %v775 = vunpack.c.h.b16 %v691
    %v776 = vunpack.c.l.b16 %v692
    %v777 = vpack.c.b16 %v732, %v729
    %v778 = vpack.c.b16 %v733, %v730
    %v779 = vpack.c.b16 %v734, %v731
    %v780 = vpack.c.b16 %v738, %v735
    %v781 = vpack.c.b16 %v739, %v736
    %v782 = vpack.c.b16 %v740, %v737
    %v783 = vpack.c.b16 %v744, %v741
    %v784 = vpack.c.b16 %v745, %v742
    %v785 = vpack.c.b16 %v746, %v743
    %v786 = vpack.c.b16 %v750, %v747
    %v787 = vpack.c.b16 %v751, %v748
    %v788 = vpack.c.b16 %v752, %v749
    %v789 = vpack.c.b16 %v756, %v753
    %v790 = vpack.c.b16 %v757, %v754
    %v791 = vpack.c.b16 %v758, %v755
    %v792 = vpack.c.b16 %v762, %v759
    %v793 = vpack.c.b16 %v763, %v760
    %v794 = vpack.c.b16 %v764, %v761
    %v795 = vpack.c.b16 %v768, %v765
    %v796 = vpack.c.b16 %v769, %v766
    %v797 = vpack.c.b16 %v770, %v767
    %v798 = vpack.c.b16 %v774, %v771
    %v799 = vpack.c.b16 %v775, %v772
    %v800 = vpack.c.b16 %v776, %v773
    %825 = vmatpush.bf16.msra.mxu0 %v798
    %826 = vmatpush.bf16.msra.mxu0 %v795
    %827 = vmatpush.bf16.msra.mxu0 %v792
    %828 = vmatpush.bf16.msra.mxu0 %v789
    %829 = vmatpush.bf16.msra.mxu0 %v786
    %830 = vmatpush.bf16.msra.mxu0 %v783
    %831 = vmatpush.bf16.msra.mxu0 %v780
    %832 = vmatpush.bf16.msra.mxu0 %v777
    %833 = vmatmul.bf16.gmra.mxu0 %v659
    %v834 = vpop.f32.mrf.mxu0
    %v835 = vadd.f32 %v694, %v834
    %v836 = vpop.f32.mrf.mxu0
    %837 = vdwg.mxu0
    %838 = vmatpush.bf16.msra.mxu0 %v799
    %839 = vmatpush.bf16.msra.mxu0 %v796
    %840 = vmatpush.bf16.msra.mxu0 %v793
    %841 = vmatpush.bf16.msra.mxu0 %v790
    %842 = vmatpush.bf16.msra.mxu0 %v787
    %843 = vmatpush.bf16.msra.mxu0 %v784
    %844 = vmatpush.bf16.msra.mxu0 %v781
    %845 = vmatpush.bf16.msra.mxu0 %v778
    %846 = vmatmul.bf16.gmra.mxu0 %v659
    %v847 = vpop.f32.mrf.mxu0
    %v848 = vadd.f32 %v695, %v847
    %v849 = vpop.f32.mrf.mxu0
    %850 = vdwg.mxu0
    %851 = vmatpush.bf16.msra.mxu0 %v800
    %852 = vmatpush.bf16.msra.mxu0 %v797
    %853 = vmatpush.bf16.msra.mxu0 %v794
    %854 = vmatpush.bf16.msra.mxu0 %v791
    %855 = vmatpush.bf16.msra.mxu0 %v788
    %856 = vmatpush.bf16.msra.mxu0 %v785
    %857 = vmatpush.bf16.msra.mxu0 %v782
    %858 = vmatpush.bf16.msra.mxu0 %v779
    %859 = vmatmul.bf16.gmra.mxu0 %v659
    %v860 = vpop.f32.mrf.mxu0
    %v861 = vadd.f32 %v696, %v860
    %v862 = vpop.f32.mrf.mxu0
    %863 = vdwg.mxu0
    %v864 = vpack.c.bf16 %v455, %v455
    %s865 = scalar_lea.vmem [#allocation11], 384
    %v866 = vld [vmem:[%s865] sm:$0xff]
    %v867 = vld [vmem:[%s865 + $0x8] sm:$0xf]
    %v868 = vld [vmem:[%s865 + $0xc] sm:$0xff]
    %v869 = vld [vmem:[%s865 + $0x14] sm:$0xf]
    %v870 = vld [vmem:[%s865 + $0x18] sm:$0xff]
    %v871 = vld [vmem:[%s865 + $0x20] sm:$0xf]
    %v872 = vld [vmem:[%s865 + $0x24] sm:$0xff]
    %v873 = vld [vmem:[%s865 + $0x2c] sm:$0xf]
    %v874 = vld [vmem:[%s865 + $0x30] sm:$0xff]
    %v875 = vld [vmem:[%s865 + $0x38] sm:$0xf]
    %v876 = vld [vmem:[%s865 + $0x3c] sm:$0xff]
    %v877 = vld [vmem:[%s865 + $0x44] sm:$0xf]
    %v878 = vld [vmem:[%s865 + $0x48] sm:$0xff]
    %v879 = vld [vmem:[%s865 + $0x50] sm:$0xf]
    %v880 = vld [vmem:[%s865 + $0x54] sm:$0xff]
    %v881 = vld [vmem:[%s865 + $0x5c] sm:$0xf]
    %v882 = vld [vmem:[%s865 + $0x60] sm:$0xff]
    %v883 = vld [vmem:[%s865 + $0x68] sm:$0xf]
    %v884 = vld [vmem:[%s865 + $0x6c] sm:$0xff]
    %v885 = vld [vmem:[%s865 + $0x74] sm:$0xf]
    %v886 = vld [vmem:[%s865 + $0x78] sm:$0xff]
    %v887 = vld [vmem:[%s865 + $0x80] sm:$0xf]
    %v888 = vld [vmem:[%s865 + $0x84] sm:$0xff]
    %v889 = vld [vmem:[%s865 + $0x8c] sm:$0xf]
    %v890 = vld [vmem:[%s865 + $0x90] sm:$0xff]
    %v891 = vld [vmem:[%s865 + $0x98] sm:$0xf]
    %v892 = vld [vmem:[%s865 + $0x9c] sm:$0xff]
    %v893 = vld [vmem:[%s865 + $0xa4] sm:$0xf]
    %v894 = vld [vmem:[%s865 + $0xa8] sm:$0xff]
    %v895 = vld [vmem:[%s865 + $0xb0] sm:$0xf]
    %v896 = vld [vmem:[%s865 + $0xb4] sm:$0xff]
    %v897 = vld [vmem:[%s865 + $0xbc] sm:$0xf]
    %s898 = scalar_lea.vmem [#allocation13], 48
    %v899 = vld [vmem:[%s898] sm:$0xff]
    %v900 = vld [vmem:[%s898 + $0x8] sm:$0xff]
    %v901 = vld [vmem:[%s898 + $0x10] sm:$0xff]
    %v934 = vunpack.c.l.b16 %v866
    %v935 = vunpack.c.h.b16 %v866
    %v936 = vunpack.c.l.b16 %v867
    %v937 = vunpack.c.l.b16 %v868
    %v938 = vunpack.c.h.b16 %v868
    %v939 = vunpack.c.l.b16 %v869
    %v940 = vunpack.c.l.b16 %v870
    %v941 = vunpack.c.h.b16 %v870
    %v942 = vunpack.c.l.b16 %v871
    %v943 = vunpack.c.l.b16 %v872
    %v944 = vunpack.c.h.b16 %v872
    %v945 = vunpack.c.l.b16 %v873
    %v946 = vunpack.c.l.b16 %v874
    %v947 = vunpack.c.h.b16 %v874
    %v948 = vunpack.c.l.b16 %v875
    %v949 = vunpack.c.l.b16 %v876
    %v950 = vunpack.c.h.b16 %v876
    %v951 = vunpack.c.l.b16 %v877
    %v952 = vunpack.c.l.b16 %v878
    %v953 = vunpack.c.h.b16 %v878
    %v954 = vunpack.c.l.b16 %v879
    %v955 = vunpack.c.l.b16 %v880
    %v956 = vunpack.c.h.b16 %v880
    %v957 = vunpack.c.l.b16 %v881
    %v958 = vunpack.c.l.b16 %v882
    %v959 = vunpack.c.h.b16 %v882
    %v960 = vunpack.c.l.b16 %v883
    %v961 = vunpack.c.l.b16 %v884
    %v962 = vunpack.c.h.b16 %v884
    %v963 = vunpack.c.l.b16 %v885
    %v964 = vunpack.c.l.b16 %v886
    %v965 = vunpack.c.h.b16 %v886
    %v966 = vunpack.c.l.b16 %v887
    %v967 = vunpack.c.l.b16 %v888
    %v968 = vunpack.c.h.b16 %v888
    %v969 = vunpack.c.l.b16 %v889
    %v970 = vunpack.c.l.b16 %v890
    %v971 = vunpack.c.h.b16 %v890
    %v972 = vunpack.c.l.b16 %v891
    %v973 = vunpack.c.l.b16 %v892
    %v974 = vunpack.c.h.b16 %v892
    %v975 = vunpack.c.l.b16 %v893
    %v976 = vunpack.c.l.b16 %v894
    %v977 = vunpack.c.h.b16 %v894
    %v978 = vunpack.c.l.b16 %v895
    %v979 = vunpack.c.l.b16 %v896
    %v980 = vunpack.c.h.b16 %v896
    %v981 = vunpack.c.l.b16 %v897
    %v982 = vpack.c.b16 %v937, %v934
    %v983 = vpack.c.b16 %v938, %v935
    %v984 = vpack.c.b16 %v939, %v936
    %v985 = vpack.c.b16 %v943, %v940
    %v986 = vpack.c.b16 %v944, %v941
    %v987 = vpack.c.b16 %v945, %v942
    %v988 = vpack.c.b16 %v949, %v946
    %v989 = vpack.c.b16 %v950, %v947
    %v990 = vpack.c.b16 %v951, %v948
    %v991 = vpack.c.b16 %v955, %v952
    %v992 = vpack.c.b16 %v956, %v953
    %v993 = vpack.c.b16 %v957, %v954
    %v994 = vpack.c.b16 %v961, %v958
    %v995 = vpack.c.b16 %v962, %v959
    %v996 = vpack.c.b16 %v963, %v960
    %v997 = vpack.c.b16 %v967, %v964
    %v998 = vpack.c.b16 %v968, %v965
    %v999 = vpack.c.b16 %v969, %v966
    %v1000 = vpack.c.b16 %v973, %v970
    %v1001 = vpack.c.b16 %v974, %v971
    %v1002 = vpack.c.b16 %v975, %v972
    %v1003 = vpack.c.b16 %v979, %v976
    %v1004 = vpack.c.b16 %v980, %v977
    %v1005 = vpack.c.b16 %v981, %v978
    %1030 = vmatpush.bf16.msra.mxu0 %v1003
    %1031 = vmatpush.bf16.msra.mxu0 %v1000
    %1032 = vmatpush.bf16.msra.mxu0 %v997
    %1033 = vmatpush.bf16.msra.mxu0 %v994
    %1034 = vmatpush.bf16.msra.mxu0 %v991
    %1035 = vmatpush.bf16.msra.mxu0 %v988
    %1036 = vmatpush.bf16.msra.mxu0 %v985
    %1037 = vmatpush.bf16.msra.mxu0 %v982
    %1038 = vmatmul.bf16.gmra.mxu0 %v864
    %v1039 = vpop.f32.mrf.mxu0
    %v1040 = vadd.f32 %v899, %v1039
    %v1041 = vpop.f32.mrf.mxu0
    %1042 = vdwg.mxu0
    %1043 = vmatpush.bf16.msra.mxu0 %v1004
    %1044 = vmatpush.bf16.msra.mxu0 %v1001
    %1045 = vmatpush.bf16.msra.mxu0 %v998
    %1046 = vmatpush.bf16.msra.mxu0 %v995
    %1047 = vmatpush.bf16.msra.mxu0 %v992
    %1048 = vmatpush.bf16.msra.mxu0 %v989
    %1049 = vmatpush.bf16.msra.mxu0 %v986
    %1050 = vmatpush.bf16.msra.mxu0 %v983
    %1051 = vmatmul.bf16.gmra.mxu0 %v864
    %v1052 = vpop.f32.mrf.mxu0
    %v1053 = vadd.f32 %v900, %v1052
    %v1054 = vpop.f32.mrf.mxu0
    %1055 = vdwg.mxu0
    %1056 = vmatpush.bf16.msra.mxu0 %v1005
    %1057 = vmatpush.bf16.msra.mxu0 %v1002
    %1058 = vmatpush.bf16.msra.mxu0 %v999
    %1059 = vmatpush.bf16.msra.mxu0 %v996
    %1060 = vmatpush.bf16.msra.mxu0 %v993
    %1061 = vmatpush.bf16.msra.mxu0 %v990
    %1062 = vmatpush.bf16.msra.mxu0 %v987
    %1063 = vmatpush.bf16.msra.mxu0 %v984
    %1064 = vmatmul.bf16.gmra.mxu0 %v864
    %v1065 = vpop.f32.mrf.mxu0
    %v1066 = vadd.f32 %v901, %v1065
    %v1067 = vpop.f32.mrf.mxu0
    %1068 = vdwg.mxu0
    %v1069 = vld [vmem:[#allocation3] sm:$0xff]
    %v1070 = vld [vmem:[#allocation3 + $0x8] sm:$0xff]
    %v1071 = vld [vmem:[#allocation3 + $0x10] sm:$0xff]
    %v1072 = vadd.f32 %v1069, %v630
    %v1073 = vxor.u32 %v1072, 2147483648
    %v1074 = vmul.f32 %v1073, 1.442695
    %v1075 = vpow.pop %v1074
    %v1076 = vadd.f32 %v1075, 1.0
    %v1077 = vrcp.pop %v1076
    %v1078 = vmul.f32 %v1076, %v1077
    %v1079 = vsub.f32 1.0, %v1078
    %v1080 = vmul.f32 %v1077, %v1079
    %v1081 = vadd.f32 %v1077, %v1080
    %vm1082 = vweird.f32 %v1076
    %vm1083 = vweird.f32 %v1077
    %vm1084 = vmor %vm1082, %vm1083
    %v1085 = vsel %vm1084, %v1077, %v1081
    %v1086 = vand.u32 2147483647, %v1076
    %vm1087 = vcmp.eq.f32.partialorder %v1086, 8.507059e+37
    %v1088 = vand.u32 %v1076, 2147483648
    %v1089 = vor.u32 1.1754944e-38, %v1088
    %v1090 = vsel %vm1087, %v1089, %v1085
    %v1091 = vmul.f32 1.0, %v1090
    %v1092 = vadd.f32 %v1070, %v643
    %v1093 = vxor.u32 %v1092, 2147483648
    %v1094 = vmul.f32 %v1093, 1.442695
    %v1095 = vpow.pop %v1094
    %v1096 = vadd.f32 %v1095, 1.0
    %v1097 = vrcp.pop %v1096
    %v1098 = vmul.f32 %v1096, %v1097
    %v1099 = vsub.f32 1.0, %v1098
    %v1100 = vmul.f32 %v1097, %v1099
    %v1101 = vadd.f32 %v1097, %v1100
    %vm1102 = vweird.f32 %v1096
    %vm1103 = vweird.f32 %v1097
    %vm1104 = vmor %vm1102, %vm1103
    %v1105 = vsel %vm1104, %v1097, %v1101
    %v1106 = vand.u32 2147483647, %v1096
    %vm1107 = vcmp.eq.f32.partialorder %v1106, 8.507059e+37
    %v1108 = vand.u32 %v1096, 2147483648
    %v1109 = vor.u32 1.1754944e-38, %v1108
    %v1110 = vsel %vm1107, %v1109, %v1105
    %v1111 = vmul.f32 1.0, %v1110
    %v1112 = vmul.f32 %v1091, %v656
    %v1113 = vadd.f32 %v1071, %v1112
    %v1114 = vtanh.pop %v1113
    %v1115 = vsub.f32 1.0, %v1111
    %v1116 = vmul.f32 %v1115, %v1114
    %v1117 = vmul.f32 %v1111, %v451
    %v1118 = vadd.f32 %v1116, %v1117
    %1119 = vst [vmem:[#allocation4] sm:$0xff] %v1118
    %v1120 = vpack.c.bf16 %v1118, %v1118
    %s1121 = scalar_lea.vmem [#allocation8], 192
    %v1122 = vld [vmem:[%s1121] sm:$0xff]
    %v1123 = vld [vmem:[%s1121 + $0x8] sm:$0xf]
    %v1124 = vld [vmem:[%s1121 + $0xc] sm:$0xff]
    %v1125 = vld [vmem:[%s1121 + $0x14] sm:$0xf]
    %v1126 = vld [vmem:[%s1121 + $0x18] sm:$0xff]
    %v1127 = vld [vmem:[%s1121 + $0x20] sm:$0xf]
    %v1128 = vld [vmem:[%s1121 + $0x24] sm:$0xff]
    %v1129 = vld [vmem:[%s1121 + $0x2c] sm:$0xf]
    %v1130 = vld [vmem:[%s1121 + $0x30] sm:$0xff]
    %v1131 = vld [vmem:[%s1121 + $0x38] sm:$0xf]
    %v1132 = vld [vmem:[%s1121 + $0x3c] sm:$0xff]
    %v1133 = vld [vmem:[%s1121 + $0x44] sm:$0xf]
    %v1134 = vld [vmem:[%s1121 + $0x48] sm:$0xff]
    %v1135 = vld [vmem:[%s1121 + $0x50] sm:$0xf]
    %v1136 = vld [vmem:[%s1121 + $0x54] sm:$0xff]
    %v1137 = vld [vmem:[%s1121 + $0x5c] sm:$0xf]
    %v1138 = vld [vmem:[%s1121 + $0x60] sm:$0xff]
    %v1139 = vld [vmem:[%s1121 + $0x68] sm:$0xf]
    %v1140 = vld [vmem:[%s1121 + $0x6c] sm:$0xff]
    %v1141 = vld [vmem:[%s1121 + $0x74] sm:$0xf]
    %v1142 = vld [vmem:[%s1121 + $0x78] sm:$0xff]
    %v1143 = vld [vmem:[%s1121 + $0x80] sm:$0xf]
    %v1144 = vld [vmem:[%s1121 + $0x84] sm:$0xff]
    %v1145 = vld [vmem:[%s1121 + $0x8c] sm:$0xf]
    %v1146 = vld [vmem:[%s1121 + $0x90] sm:$0xff]
    %v1147 = vld [vmem:[%s1121 + $0x98] sm:$0xf]
    %v1148 = vld [vmem:[%s1121 + $0x9c] sm:$0xff]
    %v1149 = vld [vmem:[%s1121 + $0xa4] sm:$0xf]
    %v1150 = vld [vmem:[%s1121 + $0xa8] sm:$0xff]
    %v1151 = vld [vmem:[%s1121 + $0xb0] sm:$0xf]
    %v1152 = vld [vmem:[%s1121 + $0xb4] sm:$0xff]
    %v1153 = vld [vmem:[%s1121 + $0xbc] sm:$0xf]
    %s1154 = scalar_lea.vmem [#allocation10], 24
    %v1155 = vld [vmem:[%s1154] sm:$0xff]
    %v1156 = vld [vmem:[%s1154 + $0x8] sm:$0xff]
    %v1157 = vld [vmem:[%s1154 + $0x10] sm:$0xff]
    %v1190 = vunpack.c.l.b16 %v1122
    %v1191 = vunpack.c.h.b16 %v1122
    %v1192 = vunpack.c.l.b16 %v1123
    %v1193 = vunpack.c.l.b16 %v1124
    %v1194 = vunpack.c.h.b16 %v1124
    %v1195 = vunpack.c.l.b16 %v1125
    %v1196 = vunpack.c.l.b16 %v1126
    %v1197 = vunpack.c.h.b16 %v1126
    %v1198 = vunpack.c.l.b16 %v1127
    %v1199 = vunpack.c.l.b16 %v1128
    %v1200 = vunpack.c.h.b16 %v1128
    %v1201 = vunpack.c.l.b16 %v1129
    %v1202 = vunpack.c.l.b16 %v1130
    %v1203 = vunpack.c.h.b16 %v1130
    %v1204 = vunpack.c.l.b16 %v1131
    %v1205 = vunpack.c.l.b16 %v1132
    %v1206 = vunpack.c.h.b16 %v1132
    %v1207 = vunpack.c.l.b16 %v1133
    %v1208 = vunpack.c.l.b16 %v1134
    %v1209 = vunpack.c.h.b16 %v1134
    %v1210 = vunpack.c.l.b16 %v1135
    %v1211 = vunpack.c.l.b16 %v1136
    %v1212 = vunpack.c.h.b16 %v1136
    %v1213 = vunpack.c.l.b16 %v1137
    %v1214 = vunpack.c.l.b16 %v1138
    %v1215 = vunpack.c.h.b16 %v1138
    %v1216 = vunpack.c.l.b16 %v1139
    %v1217 = vunpack.c.l.b16 %v1140
    %v1218 = vunpack.c.h.b16 %v1140
    %v1219 = vunpack.c.l.b16 %v1141
    %v1220 = vunpack.c.l.b16 %v1142
    %v1221 = vunpack.c.h.b16 %v1142
    %v1222 = vunpack.c.l.b16 %v1143
    %v1223 = vunpack.c.l.b16 %v1144
    %v1224 = vunpack.c.h.b16 %v1144
    %v1225 = vunpack.c.l.b16 %v1145
    %v1226 = vunpack.c.l.b16 %v1146
    %v1227 = vunpack.c.h.b16 %v1146
    %v1228 = vunpack.c.l.b16 %v1147
    %v1229 = vunpack.c.l.b16 %v1148
    %v1230 = vunpack.c.h.b16 %v1148
    %v1231 = vunpack.c.l.b16 %v1149
    %v1232 = vunpack.c.l.b16 %v1150
    %v1233 = vunpack.c.h.b16 %v1150
    %v1234 = vunpack.c.l.b16 %v1151
    %v1235 = vunpack.c.l.b16 %v1152
    %v1236 = vunpack.c.h.b16 %v1152
    %v1237 = vunpack.c.l.b16 %v1153
    %v1238 = vpack.c.b16 %v1193, %v1190
    %v1239 = vpack.c.b16 %v1194, %v1191
    %v1240 = vpack.c.b16 %v1195, %v1192
    %v1241 = vpack.c.b16 %v1199, %v1196
    %v1242 = vpack.c.b16 %v1200, %v1197
    %v1243 = vpack.c.b16 %v1201, %v1198
    %v1244 = vpack.c.b16 %v1205, %v1202
    %v1245 = vpack.c.b16 %v1206, %v1203
    %v1246 = vpack.c.b16 %v1207, %v1204
    %v1247 = vpack.c.b16 %v1211, %v1208
    %v1248 = vpack.c.b16 %v1212, %v1209
    %v1249 = vpack.c.b16 %v1213, %v1210
    %v1250 = vpack.c.b16 %v1217, %v1214
    %v1251 = vpack.c.b16 %v1218, %v1215
    %v1252 = vpack.c.b16 %v1219, %v1216
    %v1253 = vpack.c.b16 %v1223, %v1220
    %v1254 = vpack.c.b16 %v1224, %v1221
    %v1255 = vpack.c.b16 %v1225, %v1222
    %v1256 = vpack.c.b16 %v1229, %v1226
    %v1257 = vpack.c.b16 %v1230, %v1227
    %v1258 = vpack.c.b16 %v1231, %v1228
    %v1259 = vpack.c.b16 %v1235, %v1232
    %v1260 = vpack.c.b16 %v1236, %v1233
    %v1261 = vpack.c.b16 %v1237, %v1234
    %1286 = vmatpush.bf16.msra.mxu0 %v1259
    %1287 = vmatpush.bf16.msra.mxu0 %v1256
    %1288 = vmatpush.bf16.msra.mxu0 %v1253
    %1289 = vmatpush.bf16.msra.mxu0 %v1250
    %1290 = vmatpush.bf16.msra.mxu0 %v1247
    %1291 = vmatpush.bf16.msra.mxu0 %v1244
    %1292 = vmatpush.bf16.msra.mxu0 %v1241
    %1293 = vmatpush.bf16.msra.mxu0 %v1238
    %1294 = vmatmul.bf16.gmra.mxu0 %v1120
    %v1295 = vpop.f32.mrf.mxu0
    %v1296 = vadd.f32 %v1155, %v1295
    %v1297 = vpop.f32.mrf.mxu0
    %1298 = vdwg.mxu0
    %1299 = vmatpush.bf16.msra.mxu0 %v1260
    %1300 = vmatpush.bf16.msra.mxu0 %v1257
    %1301 = vmatpush.bf16.msra.mxu0 %v1254
    %1302 = vmatpush.bf16.msra.mxu0 %v1251
    %1303 = vmatpush.bf16.msra.mxu0 %v1248
    %1304 = vmatpush.bf16.msra.mxu0 %v1245
    %1305 = vmatpush.bf16.msra.mxu0 %v1242
    %1306 = vmatpush.bf16.msra.mxu0 %v1239
    %1307 = vmatmul.bf16.gmra.mxu0 %v1120
    %v1308 = vpop.f32.mrf.mxu0
    %v1309 = vadd.f32 %v1156, %v1308
    %v1310 = vpop.f32.mrf.mxu0
    %1311 = vdwg.mxu0
    %1312 = vmatpush.bf16.msra.mxu0 %v1261
    %1313 = vmatpush.bf16.msra.mxu0 %v1258
    %1314 = vmatpush.bf16.msra.mxu0 %v1255
    %1315 = vmatpush.bf16.msra.mxu0 %v1252
    %1316 = vmatpush.bf16.msra.mxu0 %v1249
    %1317 = vmatpush.bf16.msra.mxu0 %v1246
    %1318 = vmatpush.bf16.msra.mxu0 %v1243
    %1319 = vmatpush.bf16.msra.mxu0 %v1240
    %1320 = vmatmul.bf16.gmra.mxu0 %v1120
    %v1321 = vpop.f32.mrf.mxu0
    %v1322 = vadd.f32 %v1157, %v1321
    %v1323 = vpop.f32.mrf.mxu0
    %1324 = vdwg.mxu0
    %v1325 = vadd.f32 %v1296, %v835
    %v1326 = vxor.u32 %v1325, 2147483648
    %v1327 = vmul.f32 %v1326, 1.442695
    %v1328 = vpow.pop %v1327
    %v1329 = vadd.f32 %v1328, 1.0
    %v1330 = vrcp.pop %v1329
    %v1331 = vmul.f32 %v1329, %v1330
    %v1332 = vsub.f32 1.0, %v1331
    %v1333 = vmul.f32 %v1330, %v1332
    %v1334 = vadd.f32 %v1330, %v1333
    %vm1335 = vweird.f32 %v1329
    %vm1336 = vweird.f32 %v1330
    %vm1337 = vmor %vm1335, %vm1336
    %v1338 = vsel %vm1337, %v1330, %v1334
    %v1339 = vand.u32 2147483647, %v1329
    %vm1340 = vcmp.eq.f32.partialorder %v1339, 8.507059e+37
    %v1341 = vand.u32 %v1329, 2147483648
    %v1342 = vor.u32 1.1754944e-38, %v1341
    %v1343 = vsel %vm1340, %v1342, %v1338
    %v1344 = vmul.f32 1.0, %v1343
    %v1345 = vadd.f32 %v1309, %v848
    %v1346 = vxor.u32 %v1345, 2147483648
    %v1347 = vmul.f32 %v1346, 1.442695
    %v1348 = vpow.pop %v1347
    %v1349 = vadd.f32 %v1348, 1.0
    %v1350 = vrcp.pop %v1349
    %v1351 = vmul.f32 %v1349, %v1350
    %v1352 = vsub.f32 1.0, %v1351
    %v1353 = vmul.f32 %v1350, %v1352
    %v1354 = vadd.f32 %v1350, %v1353
    %vm1355 = vweird.f32 %v1349
    %vm1356 = vweird.f32 %v1350
    %vm1357 = vmor %vm1355, %vm1356
    %v1358 = vsel %vm1357, %v1350, %v1354
    %v1359 = vand.u32 2147483647, %v1349
    %vm1360 = vcmp.eq.f32.partialorder %v1359, 8.507059e+37
    %v1361 = vand.u32 %v1349, 2147483648
    %v1362 = vor.u32 1.1754944e-38, %v1361
    %v1363 = vsel %vm1360, %v1362, %v1358
    %v1364 = vmul.f32 1.0, %v1363
    %v1365 = vmul.f32 %v1344, %v861
    %v1366 = vadd.f32 %v1322, %v1365
    %v1367 = vtanh.pop %v1366
    %v1368 = vsub.f32 1.0, %v1364
    %v1369 = vmul.f32 %v1368, %v1367
    %v1370 = vmul.f32 %v1364, %v453
    %v1371 = vadd.f32 %v1369, %v1370
    %s1372 = scalar_lea.vmem [#allocation4], 8
    %1373 = vst [vmem:[%s1372] sm:$0xff] %v1371
    %v1374 = vpack.c.bf16 %v1371, %v1371
    %s1375 = scalar_lea.vmem [#allocation8], 384
    %v1376 = vld [vmem:[%s1375] sm:$0xff]
    %v1377 = vld [vmem:[%s1375 + $0x8] sm:$0xf]
    %v1378 = vld [vmem:[%s1375 + $0xc] sm:$0xff]
    %v1379 = vld [vmem:[%s1375 + $0x14] sm:$0xf]
    %v1380 = vld [vmem:[%s1375 + $0x18] sm:$0xff]
    %v1381 = vld [vmem:[%s1375 + $0x20] sm:$0xf]
    %v1382 = vld [vmem:[%s1375 + $0x24] sm:$0xff]
    %v1383 = vld [vmem:[%s1375 + $0x2c] sm:$0xf]
    %v1384 = vld [vmem:[%s1375 + $0x30] sm:$0xff]
    %v1385 = vld [vmem:[%s1375 + $0x38] sm:$0xf]
    %v1386 = vld [vmem:[%s1375 + $0x3c] sm:$0xff]
    %v1387 = vld [vmem:[%s1375 + $0x44] sm:$0xf]
    %v1388 = vld [vmem:[%s1375 + $0x48] sm:$0xff]
    %v1389 = vld [vmem:[%s1375 + $0x50] sm:$0xf]
    %v1390 = vld [vmem:[%s1375 + $0x54] sm:$0xff]
    %v1391 = vld [vmem:[%s1375 + $0x5c] sm:$0xf]
    %v1392 = vld [vmem:[%s1375 + $0x60] sm:$0xff]
    %v1393 = vld [vmem:[%s1375 + $0x68] sm:$0xf]
    %v1394 = vld [vmem:[%s1375 + $0x6c] sm:$0xff]
    %v1395 = vld [vmem:[%s1375 + $0x74] sm:$0xf]
    %v1396 = vld [vmem:[%s1375 + $0x78] sm:$0xff]
    %v1397 = vld [vmem:[%s1375 + $0x80] sm:$0xf]
    %v1398 = vld [vmem:[%s1375 + $0x84] sm:$0xff]
    %v1399 = vld [vmem:[%s1375 + $0x8c] sm:$0xf]
    %v1400 = vld [vmem:[%s1375 + $0x90] sm:$0xff]
    %v1401 = vld [vmem:[%s1375 + $0x98] sm:$0xf]
    %v1402 = vld [vmem:[%s1375 + $0x9c] sm:$0xff]
    %v1403 = vld [vmem:[%s1375 + $0xa4] sm:$0xf]
    %v1404 = vld [vmem:[%s1375 + $0xa8] sm:$0xff]
    %v1405 = vld [vmem:[%s1375 + $0xb0] sm:$0xf]
    %v1406 = vld [vmem:[%s1375 + $0xb4] sm:$0xff]
    %v1407 = vld [vmem:[%s1375 + $0xbc] sm:$0xf]
    %s1408 = scalar_lea.vmem [#allocation10], 48
    %v1409 = vld [vmem:[%s1408] sm:$0xff]
    %v1410 = vld [vmem:[%s1408 + $0x8] sm:$0xff]
    %v1411 = vld [vmem:[%s1408 + $0x10] sm:$0xff]
    %v1444 = vunpack.c.l.b16 %v1376
    %v1445 = vunpack.c.h.b16 %v1376
    %v1446 = vunpack.c.l.b16 %v1377
    %v1447 = vunpack.c.l.b16 %v1378
    %v1448 = vunpack.c.h.b16 %v1378
    %v1449 = vunpack.c.l.b16 %v1379
    %v1450 = vunpack.c.l.b16 %v1380
    %v1451 = vunpack.c.h.b16 %v1380
    %v1452 = vunpack.c.l.b16 %v1381
    %v1453 = vunpack.c.l.b16 %v1382
    %v1454 = vunpack.c.h.b16 %v1382
    %v1455 = vunpack.c.l.b16 %v1383
    %v1456 = vunpack.c.l.b16 %v1384
    %v1457 = vunpack.c.h.b16 %v1384
    %v1458 = vunpack.c.l.b16 %v1385
    %v1459 = vunpack.c.l.b16 %v1386
    %v1460 = vunpack.c.h.b16 %v1386
    %v1461 = vunpack.c.l.b16 %v1387
    %v1462 = vunpack.c.l.b16 %v1388
    %v1463 = vunpack.c.h.b16 %v1388
    %v1464 = vunpack.c.l.b16 %v1389
    %v1465 = vunpack.c.l.b16 %v1390
    %v1466 = vunpack.c.h.b16 %v1390
    %v1467 = vunpack.c.l.b16 %v1391
    %v1468 = vunpack.c.l.b16 %v1392
    %v1469 = vunpack.c.h.b16 %v1392
    %v1470 = vunpack.c.l.b16 %v1393
    %v1471 = vunpack.c.l.b16 %v1394
    %v1472 = vunpack.c.h.b16 %v1394
    %v1473 = vunpack.c.l.b16 %v1395
    %v1474 = vunpack.c.l.b16 %v1396
    %v1475 = vunpack.c.h.b16 %v1396
    %v1476 = vunpack.c.l.b16 %v1397
    %v1477 = vunpack.c.l.b16 %v1398
    %v1478 = vunpack.c.h.b16 %v1398
    %v1479 = vunpack.c.l.b16 %v1399
    %v1480 = vunpack.c.l.b16 %v1400
    %v1481 = vunpack.c.h.b16 %v1400
    %v1482 = vunpack.c.l.b16 %v1401
    %v1483 = vunpack.c.l.b16 %v1402
    %v1484 = vunpack.c.h.b16 %v1402
    %v1485 = vunpack.c.l.b16 %v1403
    %v1486 = vunpack.c.l.b16 %v1404
    %v1487 = vunpack.c.h.b16 %v1404
    %v1488 = vunpack.c.l.b16 %v1405
    %v1489 = vunpack.c.l.b16 %v1406
    %v1490 = vunpack.c.h.b16 %v1406
    %v1491 = vunpack.c.l.b16 %v1407
    %v1492 = vpack.c.b16 %v1447, %v1444
    %v1493 = vpack.c.b16 %v1448, %v1445
    %v1494 = vpack.c.b16 %v1449, %v1446
    %v1495 = vpack.c.b16 %v1453, %v1450
    %v1496 = vpack.c.b16 %v1454, %v1451
    %v1497 = vpack.c.b16 %v1455, %v1452
    %v1498 = vpack.c.b16 %v1459, %v1456
    %v1499 = vpack.c.b16 %v1460, %v1457
    %v1500 = vpack.c.b16 %v1461, %v1458
    %v1501 = vpack.c.b16 %v1465, %v1462
    %v1502 = vpack.c.b16 %v1466, %v1463
    %v1503 = vpack.c.b16 %v1467, %v1464
    %v1504 = vpack.c.b16 %v1471, %v1468
    %v1505 = vpack.c.b16 %v1472, %v1469
    %v1506 = vpack.c.b16 %v1473, %v1470
    %v1507 = vpack.c.b16 %v1477, %v1474
    %v1508 = vpack.c.b16 %v1478, %v1475
    %v1509 = vpack.c.b16 %v1479, %v1476
    %v1510 = vpack.c.b16 %v1483, %v1480
    %v1511 = vpack.c.b16 %v1484, %v1481
    %v1512 = vpack.c.b16 %v1485, %v1482
    %v1513 = vpack.c.b16 %v1489, %v1486
    %v1514 = vpack.c.b16 %v1490, %v1487
    %v1515 = vpack.c.b16 %v1491, %v1488
    %1540 = vmatpush.bf16.msra.mxu0 %v1513
    %1541 = vmatpush.bf16.msra.mxu0 %v1510
    %1542 = vmatpush.bf16.msra.mxu0 %v1507
    %1543 = vmatpush.bf16.msra.mxu0 %v1504
    %1544 = vmatpush.bf16.msra.mxu0 %v1501
    %1545 = vmatpush.bf16.msra.mxu0 %v1498
    %1546 = vmatpush.bf16.msra.mxu0 %v1495
    %1547 = vmatpush.bf16.msra.mxu0 %v1492
    %1548 = vmatmul.bf16.gmra.mxu0 %v1374
    %v1549 = vpop.f32.mrf.mxu0
    %v1550 = vadd.f32 %v1409, %v1549
    %v1551 = vpop.f32.mrf.mxu0
    %1552 = vdwg.mxu0
    %1553 = vmatpush.bf16.msra.mxu0 %v1514
    %1554 = vmatpush.bf16.msra.mxu0 %v1511
    %1555 = vmatpush.bf16.msra.mxu0 %v1508
    %1556 = vmatpush.bf16.msra.mxu0 %v1505
    %1557 = vmatpush.bf16.msra.mxu0 %v1502
    %1558 = vmatpush.bf16.msra.mxu0 %v1499
    %1559 = vmatpush.bf16.msra.mxu0 %v1496
    %1560 = vmatpush.bf16.msra.mxu0 %v1493
    %1561 = vmatmul.bf16.gmra.mxu0 %v1374
    %v1562 = vpop.f32.mrf.mxu0
    %v1563 = vadd.f32 %v1410, %v1562
    %v1564 = vpop.f32.mrf.mxu0
    %1565 = vdwg.mxu0
    %1566 = vmatpush.bf16.msra.mxu0 %v1515
    %1567 = vmatpush.bf16.msra.mxu0 %v1512
    %1568 = vmatpush.bf16.msra.mxu0 %v1509
    %1569 = vmatpush.bf16.msra.mxu0 %v1506
    %1570 = vmatpush.bf16.msra.mxu0 %v1503
    %1571 = vmatpush.bf16.msra.mxu0 %v1500
    %1572 = vmatpush.bf16.msra.mxu0 %v1497
    %1573 = vmatpush.bf16.msra.mxu0 %v1494
    %1574 = vmatmul.bf16.gmra.mxu0 %v1374
    %v1575 = vpop.f32.mrf.mxu0
    %v1576 = vadd.f32 %v1411, %v1575
    %v1577 = vpop.f32.mrf.mxu0
    %1578 = vdwg.mxu0
    %v1579 = vadd.f32 %v1550, %v1040
    %v1580 = vxor.u32 %v1579, 2147483648
    %v1581 = vmul.f32 %v1580, 1.442695
    %v1582 = vpow.pop %v1581
    %v1583 = vadd.f32 %v1582, 1.0
    %v1584 = vrcp.pop %v1583
    %v1585 = vmul.f32 %v1583, %v1584
    %v1586 = vsub.f32 1.0, %v1585
    %v1587 = vmul.f32 %v1584, %v1586
    %v1588 = vadd.f32 %v1584, %v1587
    %vm1589 = vweird.f32 %v1583
    %vm1590 = vweird.f32 %v1584
    %vm1591 = vmor %vm1589, %vm1590
    %v1592 = vsel %vm1591, %v1584, %v1588
    %v1593 = vand.u32 2147483647, %v1583
    %vm1594 = vcmp.eq.f32.partialorder %v1593, 8.507059e+37
    %v1595 = vand.u32 %v1583, 2147483648
    %v1596 = vor.u32 1.1754944e-38, %v1595
    %v1597 = vsel %vm1594, %v1596, %v1592
    %v1598 = vmul.f32 1.0, %v1597
    %v1599 = vadd.f32 %v1563, %v1053
    %v1600 = vxor.u32 %v1599, 2147483648
    %v1601 = vmul.f32 %v1600, 1.442695
    %v1602 = vpow.pop %v1601
    %v1603 = vadd.f32 %v1602, 1.0
    %v1604 = vrcp.pop %v1603
    %v1605 = vmul.f32 %v1603, %v1604
    %v1606 = vsub.f32 1.0, %v1605
    %v1607 = vmul.f32 %v1604, %v1606
    %v1608 = vadd.f32 %v1604, %v1607
    %vm1609 = vweird.f32 %v1603
    %vm1610 = vweird.f32 %v1604
    %vm1611 = vmor %vm1609, %vm1610
    %v1612 = vsel %vm1611, %v1604, %v1608
    %v1613 = vand.u32 2147483647, %v1603
    %vm1614 = vcmp.eq.f32.partialorder %v1613, 8.507059e+37
    %v1615 = vand.u32 %v1603, 2147483648
    %v1616 = vor.u32 1.1754944e-38, %v1615
    %v1617 = vsel %vm1614, %v1616, %v1612
    %v1618 = vmul.f32 1.0, %v1617
    %v1619 = vmul.f32 %v1598, %v1066
    %v1620 = vadd.f32 %v1576, %v1619
    %v1621 = vtanh.pop %v1620
    %v1622 = vsub.f32 1.0, %v1618
    %v1623 = vmul.f32 %v1622, %v1621
    %v1624 = vmul.f32 %v1618, %v455
    %v1625 = vadd.f32 %v1623, %v1624
    %s1626 = scalar_lea.vmem [#allocation4], 16
    %1627 = vst [vmem:[%s1626] sm:$0xff] %v1625
    %1628 = vst [vmem:[#allocation18] sm:$0xff] %v1118
    %1629 = vst [vmem:[%s452] sm:$0xff] %v1371
    %1630 = vst [vmem:[%s454] sm:$0xff] %v1625
    %v1631 = vld [vmem:[#allocation4] sm:$0xff]
    %v1632 = vpack.c.bf16 %v1631, %v1631
    %v1633 = vld [vmem:[#allocation16] sm:$0xf]
    %v1634 = vld [vmem:[#allocation16 + $0x4] sm:$0xf]
    %v1635 = vld [vmem:[#allocation16 + $0x8] sm:$0xf]
    %v1636 = vld [vmem:[#allocation16 + $0xc] sm:$0xf]
    %v1637 = vld [vmem:[#allocation16 + $0x10] sm:$0xf]
    %v1638 = vld [vmem:[#allocation16 + $0x14] sm:$0xf]
    %v1639 = vld [vmem:[#allocation16 + $0x18] sm:$0xf]
    %v1640 = vld [vmem:[#allocation16 + $0x1c] sm:$0xf]
    %v1641 = vld [vmem:[#allocation16 + $0x20] sm:$0xf]
    %v1642 = vld [vmem:[#allocation16 + $0x24] sm:$0xf]
    %v1643 = vld [vmem:[#allocation16 + $0x28] sm:$0xf]
    %v1644 = vld [vmem:[#allocation16 + $0x2c] sm:$0xf]
    %v1645 = vld [vmem:[#allocation16 + $0x30] sm:$0xf]
    %v1646 = vld [vmem:[#allocation16 + $0x34] sm:$0xf]
    %v1647 = vld [vmem:[#allocation16 + $0x38] sm:$0xf]
    %v1648 = vld [vmem:[#allocation16 + $0x3c] sm:$0xf]
    %v1649 = vld [vmem:[%s1372] sm:$0xff]
    %v1650 = vpack.c.bf16 %v1649, %v1649
    %s1651 = scalar_lea.vmem [#allocation16], 64
    %v1652 = vld [vmem:[%s1651] sm:$0xf]
    %v1653 = vld [vmem:[%s1651 + $0x4] sm:$0xf]
    %v1654 = vld [vmem:[%s1651 + $0x8] sm:$0xf]
    %v1655 = vld [vmem:[%s1651 + $0xc] sm:$0xf]
    %v1656 = vld [vmem:[%s1651 + $0x10] sm:$0xf]
    %v1657 = vld [vmem:[%s1651 + $0x14] sm:$0xf]
    %v1658 = vld [vmem:[%s1651 + $0x18] sm:$0xf]
    %v1659 = vld [vmem:[%s1651 + $0x1c] sm:$0xf]
    %v1660 = vld [vmem:[%s1651 + $0x20] sm:$0xf]
    %v1661 = vld [vmem:[%s1651 + $0x24] sm:$0xf]
    %v1662 = vld [vmem:[%s1651 + $0x28] sm:$0xf]
    %v1663 = vld [vmem:[%s1651 + $0x2c] sm:$0xf]
    %v1664 = vld [vmem:[%s1651 + $0x30] sm:$0xf]
    %v1665 = vld [vmem:[%s1651 + $0x34] sm:$0xf]
    %v1666 = vld [vmem:[%s1651 + $0x38] sm:$0xf]
    %v1667 = vld [vmem:[%s1651 + $0x3c] sm:$0xf]
    %v1684 = vunpack.c.l.b16 %v1652
    %v1685 = vunpack.c.l.b16 %v1653
    %v1686 = vunpack.c.l.b16 %v1654
    %v1687 = vunpack.c.l.b16 %v1655
    %v1688 = vunpack.c.l.b16 %v1656
    %v1689 = vunpack.c.l.b16 %v1657
    %v1690 = vunpack.c.l.b16 %v1658
    %v1691 = vunpack.c.l.b16 %v1659
    %v1692 = vunpack.c.l.b16 %v1660
    %v1693 = vunpack.c.l.b16 %v1661
    %v1694 = vunpack.c.l.b16 %v1662
    %v1695 = vunpack.c.l.b16 %v1663
    %v1696 = vunpack.c.l.b16 %v1664
    %v1697 = vunpack.c.l.b16 %v1665
    %v1698 = vunpack.c.l.b16 %v1666
    %v1699 = vunpack.c.l.b16 %v1667
    %v1700 = vpack.c.b16 %v1685, %v1684
    %v1701 = vpack.c.b16 %v1687, %v1686
    %v1702 = vpack.c.b16 %v1689, %v1688
    %v1703 = vpack.c.b16 %v1691, %v1690
    %v1704 = vpack.c.b16 %v1693, %v1692
    %v1705 = vpack.c.b16 %v1695, %v1694
    %v1706 = vpack.c.b16 %v1697, %v1696
    %v1707 = vpack.c.b16 %v1699, %v1698
    %1716 = vmatpush.bf16.msra.mxu0 %v1707
    %1717 = vmatpush.bf16.msra.mxu0 %v1706
    %1718 = vmatpush.bf16.msra.mxu0 %v1705
    %1719 = vmatpush.bf16.msra.mxu0 %v1704
    %1720 = vmatpush.bf16.msra.mxu0 %v1703
    %1721 = vmatpush.bf16.msra.mxu0 %v1702
    %1722 = vmatpush.bf16.msra.mxu0 %v1701
    %1723 = vmatpush.bf16.msra.mxu0 %v1700
    %1724 = vmatmul.bf16.gmra.mxu0 %v1650
    %v1725 = vpop.f32.mrf.mxu0
    %v1726 = vadd.f32 0.0, %v1725
    %v1727 = vpop.f32.mrf.mxu0
    %1728 = vdwg.mxu0
    %v1745 = vunpack.c.l.b16 %v1633
    %v1746 = vunpack.c.l.b16 %v1634
    %v1747 = vunpack.c.l.b16 %v1635
    %v1748 = vunpack.c.l.b16 %v1636
    %v1749 = vunpack.c.l.b16 %v1637
    %v1750 = vunpack.c.l.b16 %v1638
    %v1751 = vunpack.c.l.b16 %v1639
    %v1752 = vunpack.c.l.b16 %v1640
    %v1753 = vunpack.c.l.b16 %v1641
    %v1754 = vunpack.c.l.b16 %v1642
    %v1755 = vunpack.c.l.b16 %v1643
    %v1756 = vunpack.c.l.b16 %v1644
    %v1757 = vunpack.c.l.b16 %v1645
    %v1758 = vunpack.c.l.b16 %v1646
    %v1759 = vunpack.c.l.b16 %v1647
    %v1760 = vunpack.c.l.b16 %v1648
    %v1761 = vpack.c.b16 %v1746, %v1745
    %v1762 = vpack.c.b16 %v1748, %v1747
    %v1763 = vpack.c.b16 %v1750, %v1749
    %v1764 = vpack.c.b16 %v1752, %v1751
    %v1765 = vpack.c.b16 %v1754, %v1753
    %v1766 = vpack.c.b16 %v1756, %v1755
    %v1767 = vpack.c.b16 %v1758, %v1757
    %v1768 = vpack.c.b16 %v1760, %v1759
    %1777 = vmatpush.bf16.msra.mxu0 %v1768
    %1778 = vmatpush.bf16.msra.mxu0 %v1767
    %1779 = vmatpush.bf16.msra.mxu0 %v1766
    %1780 = vmatpush.bf16.msra.mxu0 %v1765
    %1781 = vmatpush.bf16.msra.mxu0 %v1764
    %1782 = vmatpush.bf16.msra.mxu0 %v1763
    %1783 = vmatpush.bf16.msra.mxu0 %v1762
    %1784 = vmatpush.bf16.msra.mxu0 %v1761
    %1785 = vmatmul.bf16.gmra.mxu0 %v1632
    %v1786 = vpop.f32.mrf.mxu0
    %v1787 = vadd.f32 %v1726, %v1786
    %v1788 = vpop.f32.mrf.mxu0
    %1789 = vdwg.mxu0
    %v1790 = vld [vmem:[%s1626] sm:$0xff]
    %v1791 = vpack.c.bf16 %v1790, %v1790
    %s1792 = scalar_lea.vmem [#allocation16], 128
    %v1793 = vld [vmem:[%s1792] sm:$0xf]
    %v1794 = vld [vmem:[%s1792 + $0x4] sm:$0xf]
    %v1795 = vld [vmem:[%s1792 + $0x8] sm:$0xf]
    %v1796 = vld [vmem:[%s1792 + $0xc] sm:$0xf]
    %v1797 = vld [vmem:[%s1792 + $0x10] sm:$0xf]
    %v1798 = vld [vmem:[%s1792 + $0x14] sm:$0xf]
    %v1799 = vld [vmem:[%s1792 + $0x18] sm:$0xf]
    %v1800 = vld [vmem:[%s1792 + $0x1c] sm:$0xf]
    %v1801 = vld [vmem:[%s1792 + $0x20] sm:$0xf]
    %v1802 = vld [vmem:[%s1792 + $0x24] sm:$0xf]
    %v1803 = vld [vmem:[%s1792 + $0x28] sm:$0xf]
    %v1804 = vld [vmem:[%s1792 + $0x2c] sm:$0xf]
    %v1805 = vld [vmem:[%s1792 + $0x30] sm:$0xf]
    %v1806 = vld [vmem:[%s1792 + $0x34] sm:$0xf]
    %v1807 = vld [vmem:[%s1792 + $0x38] sm:$0xf]
    %v1808 = vld [vmem:[%s1792 + $0x3c] sm:$0xf]
    %v1825 = vunpack.c.l.b16 %v1793
    %v1826 = vunpack.c.l.b16 %v1794
    %v1827 = vunpack.c.l.b16 %v1795
    %v1828 = vunpack.c.l.b16 %v1796
    %v1829 = vunpack.c.l.b16 %v1797
    %v1830 = vunpack.c.l.b16 %v1798
    %v1831 = vunpack.c.l.b16 %v1799
    %v1832 = vunpack.c.l.b16 %v1800
    %v1833 = vunpack.c.l.b16 %v1801
    %v1834 = vunpack.c.l.b16 %v1802
    %v1835 = vunpack.c.l.b16 %v1803
    %v1836 = vunpack.c.l.b16 %v1804
    %v1837 = vunpack.c.l.b16 %v1805
    %v1838 = vunpack.c.l.b16 %v1806
    %v1839 = vunpack.c.l.b16 %v1807
    %v1840 = vunpack.c.l.b16 %v1808
    %v1841 = vpack.c.b16 %v1826, %v1825
    %v1842 = vpack.c.b16 %v1828, %v1827
    %v1843 = vpack.c.b16 %v1830, %v1829
    %v1844 = vpack.c.b16 %v1832, %v1831
    %v1845 = vpack.c.b16 %v1834, %v1833
    %v1846 = vpack.c.b16 %v1836, %v1835
    %v1847 = vpack.c.b16 %v1838, %v1837
    %v1848 = vpack.c.b16 %v1840, %v1839
    %1857 = vmatpush.bf16.msra.mxu0 %v1848
    %1858 = vmatpush.bf16.msra.mxu0 %v1847
    %1859 = vmatpush.bf16.msra.mxu0 %v1846
    %1860 = vmatpush.bf16.msra.mxu0 %v1845
    %1861 = vmatpush.bf16.msra.mxu0 %v1844
    %1862 = vmatpush.bf16.msra.mxu0 %v1843
    %1863 = vmatpush.bf16.msra.mxu0 %v1842
    %1864 = vmatpush.bf16.msra.mxu0 %v1841
    %1865 = vmatmul.bf16.gmra.mxu0 %v1791
    %v1866 = vpop.f32.mrf.mxu0
    %v1867 = vadd.f32 0.0, %v1866
    %v1868 = vpop.f32.mrf.mxu0
    %1869 = vdwg.mxu0
    %v1870 = vadd.f32 %v1787, %v1867
    %v1871 = vld [vmem:[%s9] sm:$0xff]
    %v1872 = vadd.f32 %v1870, %v1871
    %1873 = vst [vmem:[#allocation17] sm:$0xff] %v1872
    // Predicated region
    $region74: #{tpu_custom_call.1} parent=1 // pred_check
      _
    $region75: #{tpu_custom_call.1} parent=1 // pred_check_branch
      %1875 = sbr.rel (0) target = $region77
    $region76: #{tpu_custom_call.1} parent=1 // pred_region
      %1877 = vsyncadd [#allocation7], 0
      %s1879 = sshll.u32 [#allocation17], 4
      %s1880 = int_to_ptr.vmem [resolvable:$true] %s1879
      %s1881 = sshll.u32 %s10, 4
      %s1882 = int_to_ptr.hbm [resolvable:$true] %s1881
      %1884 = dma.vmem_to_hbm [thread:$0]  %s1880, 128, %s1882, [#allocation7]
    $region77: #{tpu_custom_call.1} parent=1 // pred_fallthru
      _
    // Predicated region
    $region78: #{tpu_custom_call.1} parent=1 // pred_check
      _
    $region79: #{tpu_custom_call.1} parent=1 // pred_check_branch
      %1886 = sbr.rel (0) target = $region81
    $region80: #{tpu_custom_call.1} parent=1 // pred_region
      %1888 = vsyncadd [#allocation19], 0
      %s1889 = sshll.u32 [#allocation18], 4
      %s1890 = int_to_ptr.vmem [resolvable:$true] %s1889
      %s1891 = sshll.u32 %s11, 4
      %s1892 = int_to_ptr.hbm [resolvable:$true] %s1891
      %1897 = dma.vmem_to_hbm [thread:$0]  %s1890, 384, %s1892, [#allocation19], 128, 128, 8
    $region81: #{tpu_custom_call.1} parent=1 // pred_fallthru
      _
    // Predicated region
    $region82: #{tpu_custom_call.1} parent=1 // pred_check
      _
    $region83: #{tpu_custom_call.1} parent=1 // pred_check_branch
      %1899 = sbr.rel (0) target = $region85
    $region84: #{tpu_custom_call.1} parent=1 // pred_region
      %1901 = dma.done [#allocation7], 128
    $region85: #{tpu_custom_call.1} parent=1 // pred_fallthru
      _
    // Predicated region
    $region86: #{tpu_custom_call.1} parent=1 // pred_check
      _
    $region87: #{tpu_custom_call.1} parent=1 // pred_check_branch
      %1903 = sbr.rel (0) target = $region89
    $region88: #{tpu_custom_call.1} parent=1 // pred_region
      %1905 = dma.done [#allocation19], 384
    $region89: #{tpu_custom_call.1} parent=1 // pred_fallthru
      _
    %1906 = vsyncpa [#allocation6], 1
    %1907 = vsyncpa [#allocation9], 1
    %1908 = vsyncpa [#allocation12], 1
    %1909 = vsyncpa [#allocation15], 1
    %1910 = vsyncpa [#allocation7], 1
    %1911 = vsyncpa [#allocation19], 1

</llo_original>
